<compile_context>
chip_gen: v7x
topology: tpu7x:2x2x1
jax: 0.10.0
libtpu: 0.0.40
codegen_flags: <defaults>
</compile_context>

<pallas_src>
import functools

import jax
import jax.numpy as jnp
import numpy as np
from jax.experimental import pallas as pl
from jax.experimental.pallas import tpu as pltpu


# --------------------------------------------------------------------------- #
# In-kernel helpers
# --------------------------------------------------------------------------- #
def _dilated_block_mask(seed, pad_ref, *, block_size, H, W):
    """Block mask (1 = keep) of shape (H, W, TC) for one channel tile.

    seed    : (Hm, Wm, TC) Bernoulli seed values in {0,1} (f32)
    pad_ref : (Hp, Wp, TC) VMEM scratch used for in-VMEM zero padding
    """
    bs = block_size
    Hm, Wm = H - bs + 1, W - bs + 1

    # Zero-pad the seed by (bs-1) on each spatial side entirely inside VMEM.
    pad_ref[...] = jnp.zeros_like(pad_ref)
    pad_ref[pl.ds(bs - 1, Hm), pl.ds(bs - 1, Wm), :] = seed
    mpad = pad_ref[...]                                   # (Hp, Wp, TC)

    # Separable bs x bs stride-1 "valid" max pool (== scatter of 1-blocks):
    # first the bs shifts along W (sublane dim) ...
    rowm = mpad[:, 0:W, :]
    for b in range(1, bs):
        rowm = jnp.maximum(rowm, mpad[:, b:b + W, :])
    # ... then the bs shifts along H (major dim).
    pooled = rowm[0:H, :, :]
    for a in range(1, bs):
        pooled = jnp.maximum(pooled, rowm[a:a + H, :, :])

    return 1.0 - pooled                                   # (H, W, TC)


def _mask_sum_kernel(seed_ref, sums_ref, pad_ref, *, block_size, H, W):
    """Pass 1: per-channel sums of the dilated block mask (no mask to HBM)."""
    bm = _dilated_block_mask(seed_ref[...], pad_ref,
                             block_size=block_size, H=H, W=W)
    col = jnp.sum(bm, axis=0)                              # (W, TC)
    sums_ref[...] = jnp.sum(col, axis=0, keepdims=True)    # (1, TC)


def _apply_kernel(scale_ref, seed_ref, x_ref, o_ref, pad_ref, *, block_size, H, W):
    """Pass 2: recompute the cheap dilation and apply mask * x * scale."""
    bm = _dilated_block_mask(seed_ref[...], pad_ref,
                             block_size=block_size, H=H, W=W)
    o_ref[...] = (x_ref[...].astype(jnp.float32) * bm * scale_ref[0]).astype(o_ref.dtype)


# --------------------------------------------------------------------------- #
# Host-side wrappers
# --------------------------------------------------------------------------- #
def _choose_channel_tile(bc, h, w, bs, vmem_budget=14 * 1024 * 1024):
    """Channels per grid step: prefer lane-dense multiples of 128 that divide
    B*C and keep double-buffered blocks + scratch under a conservative scoped-
    VMEM budget (safe on v5e/v6e/v7x defaults)."""
    hm, wm = h - bs + 1, w - bs + 1
    hp, wp = h + bs - 1, w + bs - 1
    # f32 bytes/channel: 2x-buffered (seed + x + out) blocks + 1x scratch.
    per_chan = 4 * (2 * (hm * wm + 2 * h * w) + hp * wp)
    cap = max(1, vmem_budget // per_chan)
    for tc in (1024, 512, 256, 128):
        if bc % tc == 0 and tc <= cap:
            return tc
    # Small (or 128-indivisible) channel axis: single full-dim block on lanes.
    return bc


@functools.partial(jax.jit, static_argnums=(2,))
def dropblock_from_mask(x, seed_mask, block_size):
    """DropBlock forward given a pre-sampled Bernoulli seed mask.

    x         : (B, C, H, W)
    seed_mask : (B, C, H-bs+1, W-bs+1) values in {0, 1}
    """
    B, C, H, W = x.shape
    bs = block_size
    if H < bs or W < bs:
        raise ValueError("DropBlock requires H >= block_size and W >= block_size")
    Hm, Wm = H - bs + 1, W - bs + 1
    Hp, Wp = H + bs - 1, W + bs - 1
    BC = B * C
    TC = _choose_channel_tile(BC, H, W, bs)
    grid = (BC // TC,)

    # Channels-last: big B*C axis on lanes (layout plumbing done by XLA).
    x_t = jnp.transpose(x.reshape(BC, H, W), (1, 2, 0))                        # (H, W, BC)
    seed_t = jnp.transpose(seed_mask.reshape(BC, Hm, Wm), (1, 2, 0))           # (Hm, Wm, BC)
    seed_t = seed_t.astype(jnp.float32)

    cparams = pltpu.CompilerParams(dimension_semantics=("parallel",))

    # Pass 1: per-channel block-mask sums (only the small seed mask is read).
    sums = pl.pallas_call(
        functools.partial(_mask_sum_kernel, block_size=bs, H=H, W=W),
        grid=grid,
        in_specs=[pl.BlockSpec((Hm, Wm, TC), lambda i: (0, 0, i))],
        out_specs=pl.BlockSpec((1, TC), lambda i: (0, i)),
        out_shape=jax.ShapeDtypeStruct((1, BC), jnp.float32),
        scratch_shapes=[pltpu.VMEM((Hp, Wp, TC), jnp.float32)],
        compiler_params=cparams,
    )(seed_t)

    countM = jnp.float32(BC * H * W)
    count_ones = jnp.maximum(jnp.sum(sums), 1.0)   # guard against all-dropped
    scale = (countM / count_ones).reshape(1).astype(jnp.float32)

    # Pass 2: recompute the dilation from the seed and apply the rescale.
    out_t = pl.pallas_call(
        functools.partial(_apply_kernel, block_size=bs, H=H, W=W),
        grid=grid,
        in_specs=[
            pl.BlockSpec(memory_space=pltpu.MemorySpace.SMEM),     # scale (1,)
            pl.BlockSpec((Hm, Wm, TC), lambda i: (0, 0, i)),       # seed
            pl.BlockSpec((H, W, TC), lambda i: (0, 0, i)),         # x
        ],
        out_specs=pl.BlockSpec((H, W, TC), lambda i: (0, 0, i)),
        out_shape=jax.ShapeDtypeStruct((H, W, BC), x.dtype),
        scratch_shapes=[pltpu.VMEM((Hp, Wp, TC), jnp.float32)],
        compiler_params=cparams,
    )(scale, seed_t, x_t)

    return jnp.transpose(out_t, (2, 0, 1)).reshape(B, C, H, W)


def dropblock(x, gamma, key, block_size, training=True):
    """Full DropBlock.forward equivalent (training samples the Bernoulli mask)."""
    if not training:
        return x
    B, C, H, W = x.shape
    bs = block_size
    seed_mask = jax.random.bernoulli(
        key, gamma, (B, C, H - (bs - 1), W - (bs - 1))
    ).astype(jnp.float32)
    return dropblock_from_mask(x, seed_mask, bs)


# --------------------------------------------------------------------------- #
# Pure-JAX reference (mirrors the PyTorch semantics)
# --------------------------------------------------------------------------- #
def _ref_dropblock_from_mask(x, seed_mask, block_size):
    B, C, H, W = x.shape
    bs = block_size
    mpad = jnp.pad(seed_mask, ((0, 0), (0, 0), (bs - 1, bs - 1), (bs - 1, bs - 1)))
    windows = [mpad[:, :, a:a + H, b:b + W] for a in range(bs) for b in range(bs)]
    pooled = jnp.max(jnp.stack(windows), axis=0)
    bm = 1.0 - pooled
    countM = B * C * H * W
    return bm * x * (countM / jnp.sum(bm))


if __name__ == "__main__":
    key = jax.random.PRNGKey(0)
    kx, km = jax.random.split(key)

    B, C, H, W = 2, 4, 16, 16
    block_size = 3
    gamma = 0.1

    x = jax.random.normal(kx, (B, C, H, W), dtype=jnp.float32)
    seed_mask = jax.random.bernoulli(
        km, gamma, (B, C, H - (block_size - 1), W - (block_size - 1))
    ).astype(jnp.float32)

    y = dropblock_from_mask(x, seed_mask, block_size)
    y = jax.block_until_ready(y)

    y_ref = _ref_dropblock_from_mask(x, seed_mask, block_size)
    assert y.shape == x.shape
    assert np.allclose(np.asarray(y), np.asarray(y_ref), rtol=1e-5, atol=1e-5)

    # eval-mode path (identity) for completeness
    y_eval = jax.block_until_ready(dropblock(x, gamma, km, block_size, training=False))
    assert np.allclose(np.asarray(y_eval), np.asarray(x))

    print("KERNEL_OK")
</pallas_src>

<mosaic_0001>
module attributes {stable_mosaic.version = 11 : i64} {
  func.func @_mask_sum_kernel(%arg0: i32, %arg1: memref<14x14x8xf32, #tpu.memory_space<vmem>>, %arg2: memref<1x8xf32, #tpu.memory_space<vmem>>, %arg3: memref<18x18x8xf32, #tpu.memory_space<vmem>>) attributes {dimension_semantics = [#tpu.dimension_semantics<parallel>], iteration_bounds = array<i64: 1>, scalar_prefetch = 0 : i64, scratch_operands = 1 : i64, tpu.core_type = #tpu.core_type<tc>, window_params = [{transform_indices = @transform_0, window_bounds = array<i64: 14, 14, 8>}, {transform_indices = @transform_1, window_bounds = array<i64: 1, 8>}]} {
    %c0 = arith.constant 0 : index
    %c0_0 = arith.constant 0 : index
    %c0_1 = arith.constant 0 : index
    %0 = vector.load %arg1[%c0, %c0_0, %c0_1] : memref<14x14x8xf32, #tpu.memory_space<vmem>>, vector<14x14x8xf32>
    %cst = arith.constant 0.000000e+00 : f32
    %1 = vector.broadcast %cst : f32 to vector<18x18x8xf32>
    %c0_2 = arith.constant 0 : index
    %c0_3 = arith.constant 0 : index
    %c0_4 = arith.constant 0 : index
    %2 = vector.load %arg3[%c0_2, %c0_3, %c0_4] : memref<18x18x8xf32, #tpu.memory_space<vmem>>, vector<18x18x8xf32>
    tpu.vector_store %arg3[%c0_2, %c0_3, %c0_4], %1 {strides = array<i32>} : memref<18x18x8xf32, #tpu.memory_space<vmem>>, vector<18x18x8xf32>,
    %c2 = arith.constant 2 : index
    %c2_5 = arith.constant 2 : index
    %c0_6 = arith.constant 0 : index
    %3 = vector.load %arg3[%c2, %c2_5, %c0_6] : memref<18x18x8xf32, #tpu.memory_space<vmem>>, vector<14x14x8xf32>
    tpu.vector_store %arg3[%c2, %c2_5, %c0_6], %0 {strides = array<i32>} : memref<18x18x8xf32, #tpu.memory_space<vmem>>, vector<14x14x8xf32>,
    %c0_7 = arith.constant 0 : index
    %c0_8 = arith.constant 0 : index
    %c0_9 = arith.constant 0 : index
    %4 = vector.load %arg3[%c0_7, %c0_8, %c0_9] : memref<18x18x8xf32, #tpu.memory_space<vmem>>, vector<18x18x8xf32>
    %5 = vector.extract_strided_slice %4 {offsets = [0, 0, 0], sizes = [18, 16, 8], strides = [1, 1, 1]} : vector<18x18x8xf32> to vector<18x16x8xf32>
    %6 = vector.extract_strided_slice %4 {offsets = [0, 1, 0], sizes = [18, 16, 8], strides = [1, 1, 1]} : vector<18x18x8xf32> to vector<18x16x8xf32>
    %7 = arith.maximumf %5, %6 : vector<18x16x8xf32>
    %8 = vector.extract_strided_slice %4 {offsets = [0, 2, 0], sizes = [18, 16, 8], strides = [1, 1, 1]} : vector<18x18x8xf32> to vector<18x16x8xf32>
    %9 = arith.maximumf %7, %8 : vector<18x16x8xf32>
    %10 = vector.extract_strided_slice %9 {offsets = [0, 0, 0], sizes = [16, 16, 8], strides = [1, 1, 1]} : vector<18x16x8xf32> to vector<16x16x8xf32>
    %11 = vector.extract_strided_slice %9 {offsets = [1, 0, 0], sizes = [16, 16, 8], strides = [1, 1, 1]} : vector<18x16x8xf32> to vector<16x16x8xf32>
    %12 = arith.maximumf %10, %11 : vector<16x16x8xf32>
    %13 = vector.extract_strided_slice %9 {offsets = [2, 0, 0], sizes = [16, 16, 8], strides = [1, 1, 1]} : vector<18x16x8xf32> to vector<16x16x8xf32>
    %14 = arith.maximumf %12, %13 : vector<16x16x8xf32>
    %cst_10 = arith.constant 1.000000e+00 : f32
    %15 = vector.broadcast %cst_10 : f32 to vector<16x16x8xf32>
    %16 = arith.subf %15, %14 : vector<16x16x8xf32>
    %cst_11 = arith.constant dense<0.000000e+00> : vector<16x8xf32>
    %17 = vector.multi_reduction <add>, %16, %cst_11 [0] : vector<16x16x8xf32> to vector<16x8xf32>
    %cst_12 = arith.constant dense<0.000000e+00> : vector<8xf32>
    %18 = vector.multi_reduction <add>, %17, %cst_12 [0] : vector<16x8xf32> to vector<8xf32>
    %19 = vector.shape_cast %18 : vector<8xf32> to vector<1x8xf32>
    %c0_13 = arith.constant 0 : index
    %c0_14 = arith.constant 0 : index
    %20 = vector.load %arg2[%c0_13, %c0_14] : memref<1x8xf32, #tpu.memory_space<vmem>>, vector<1x8xf32>
    tpu.vector_store %arg2[%c0_13, %c0_14], %19 {strides = array<i32>} : memref<1x8xf32, #tpu.memory_space<vmem>>, vector<1x8xf32>,
    return
  }
  func.func @transform_0(%arg0: i32) -> (i32, i32, i32) {
    %c0_i32 = arith.constant 0 : i32
    %c0_i32_0 = arith.constant 0 : i32
    %c0_i32_1 = arith.constant 0 : i32
    return %c0_i32, %c0_i32_0, %arg0 : i32, i32, i32
  }
  func.func @transform_1(%arg0: i32) -> (i32, i32) {
    %c0_i32 = arith.constant 0 : i32
    %c0_i32_0 = arith.constant 0 : i32
    return %c0_i32, %arg0 : i32, i32
  }
}

module attributes {stable_mosaic.version = 11 : i64} {
  func.func @_apply_kernel(%arg0: i32, %arg1: memref<1xf32, #tpu.memory_space<smem>>, %arg2: memref<14x14x8xf32, #tpu.memory_space<vmem>>, %arg3: memref<16x16x8xf32, #tpu.memory_space<vmem>>, %arg4: memref<16x16x8xf32, #tpu.memory_space<vmem>>, %arg5: memref<18x18x8xf32, #tpu.memory_space<vmem>>) attributes {dimension_semantics = [#tpu.dimension_semantics<parallel>], iteration_bounds = array<i64: 1>, scalar_prefetch = 0 : i64, scratch_operands = 1 : i64, tpu.core_type = #tpu.core_type<tc>, window_params = [{transform_indices = @transform_0, window_bounds = array<i64: 1>}, {transform_indices = @transform_1, window_bounds = array<i64: 14, 14, 8>}, {transform_indices = @transform_2, window_bounds = array<i64: 16, 16, 8>}, {transform_indices = @transform_3, window_bounds = array<i64: 16, 16, 8>}]} {
    %c0 = arith.constant 0 : index
    %c0_0 = arith.constant 0 : index
    %c0_1 = arith.constant 0 : index
    %0 = vector.load %arg2[%c0, %c0_0, %c0_1] : memref<14x14x8xf32, #tpu.memory_space<vmem>>, vector<14x14x8xf32>
    %cst = arith.constant 0.000000e+00 : f32
    %1 = vector.broadcast %cst : f32 to vector<18x18x8xf32>
    %c0_2 = arith.constant 0 : index
    %c0_3 = arith.constant 0 : index
    %c0_4 = arith.constant 0 : index
    %2 = vector.load %arg5[%c0_2, %c0_3, %c0_4] : memref<18x18x8xf32, #tpu.memory_space<vmem>>, vector<18x18x8xf32>
    tpu.vector_store %arg5[%c0_2, %c0_3, %c0_4], %1 {strides = array<i32>} : memref<18x18x8xf32, #tpu.memory_space<vmem>>, vector<18x18x8xf32>,
    %c2 = arith.constant 2 : index
    %c2_5 = arith.constant 2 : index
    %c0_6 = arith.constant 0 : index
    %3 = vector.load %arg5[%c2, %c2_5, %c0_6] : memref<18x18x8xf32, #tpu.memory_space<vmem>>, vector<14x14x8xf32>
    tpu.vector_store %arg5[%c2, %c2_5, %c0_6], %0 {strides = array<i32>} : memref<18x18x8xf32, #tpu.memory_space<vmem>>, vector<14x14x8xf32>,
    %c0_7 = arith.constant 0 : index
    %c0_8 = arith.constant 0 : index
    %c0_9 = arith.constant 0 : index
    %4 = vector.load %arg5[%c0_7, %c0_8, %c0_9] : memref<18x18x8xf32, #tpu.memory_space<vmem>>, vector<18x18x8xf32>
    %5 = vector.extract_strided_slice %4 {offsets = [0, 0, 0], sizes = [18, 16, 8], strides = [1, 1, 1]} : vector<18x18x8xf32> to vector<18x16x8xf32>
    %6 = vector.extract_strided_slice %4 {offsets = [0, 1, 0], sizes = [18, 16, 8], strides = [1, 1, 1]} : vector<18x18x8xf32> to vector<18x16x8xf32>
    %7 = arith.maximumf %5, %6 : vector<18x16x8xf32>
    %8 = vector.extract_strided_slice %4 {offsets = [0, 2, 0], sizes = [18, 16, 8], strides = [1, 1, 1]} : vector<18x18x8xf32> to vector<18x16x8xf32>
    %9 = arith.maximumf %7, %8 : vector<18x16x8xf32>
    %10 = vector.extract_strided_slice %9 {offsets = [0, 0, 0], sizes = [16, 16, 8], strides = [1, 1, 1]} : vector<18x16x8xf32> to vector<16x16x8xf32>
    %11 = vector.extract_strided_slice %9 {offsets = [1, 0, 0], sizes = [16, 16, 8], strides = [1, 1, 1]} : vector<18x16x8xf32> to vector<16x16x8xf32>
    %12 = arith.maximumf %10, %11 : vector<16x16x8xf32>
    %13 = vector.extract_strided_slice %9 {offsets = [2, 0, 0], sizes = [16, 16, 8], strides = [1, 1, 1]} : vector<18x16x8xf32> to vector<16x16x8xf32>
    %14 = arith.maximumf %12, %13 : vector<16x16x8xf32>
    %cst_10 = arith.constant 1.000000e+00 : f32
    %15 = vector.broadcast %cst_10 : f32 to vector<16x16x8xf32>
    %16 = arith.subf %15, %14 : vector<16x16x8xf32>
    %c0_11 = arith.constant 0 : index
    %c0_12 = arith.constant 0 : index
    %c0_13 = arith.constant 0 : index
    %17 = vector.load %arg3[%c0_11, %c0_12, %c0_13] : memref<16x16x8xf32, #tpu.memory_space<vmem>>, vector<16x16x8xf32>
    %18 = arith.mulf %17, %16 : vector<16x16x8xf32>
    %c0_14 = arith.constant 0 : index
    %19 = memref.load %arg1[%c0_14] : memref<1xf32, #tpu.memory_space<smem>>
    %20 = vector.broadcast %19 : f32 to vector<16x16x8xf32>
    %21 = arith.mulf %18, %20 : vector<16x16x8xf32>
    %c0_15 = arith.constant 0 : index
    %c0_16 = arith.constant 0 : index
    %c0_17 = arith.constant 0 : index
    %22 = vector.load %arg4[%c0_15, %c0_16, %c0_17] : memref<16x16x8xf32, #tpu.memory_space<vmem>>, vector<16x16x8xf32>
    tpu.vector_store %arg4[%c0_15, %c0_16, %c0_17], %21 {strides = array<i32>} : memref<16x16x8xf32, #tpu.memory_space<vmem>>, vector<16x16x8xf32>,
    return
  }
  func.func @transform_0(%arg0: i32) -> i32 {
    %c0_i32 = arith.constant 0 : i32
    %c0_i32_0 = arith.constant 0 : i32
    return %c0_i32 : i32
  }
  func.func @transform_1(%arg0: i32) -> (i32, i32, i32) {
    %c0_i32 = arith.constant 0 : i32
    %c0_i32_0 = arith.constant 0 : i32
    %c0_i32_1 = arith.constant 0 : i32
    return %c0_i32, %c0_i32_0, %arg0 : i32, i32, i32
  }
  func.func @transform_2(%arg0: i32) -> (i32, i32, i32) {
    %c0_i32 = arith.constant 0 : i32
    %c0_i32_0 = arith.constant 0 : i32
    %c0_i32_1 = arith.constant 0 : i32
    return %c0_i32, %c0_i32_0, %arg0 : i32, i32, i32
  }
  func.func @transform_3(%arg0: i32) -> (i32, i32, i32) {
    %c0_i32 = arith.constant 0 : i32
    %c0_i32_0 = arith.constant 0 : i32
    %c0_i32_1 = arith.constant 0 : i32
    return %c0_i32, %c0_i32_0, %arg0 : i32, i32, i32
  }
}

</mosaic_0001>

<llo_original>
// kernel: dropblock_from_mask.2
$region0: #{dropblock_from_mask.2}
  #allocation0 [shape = 'u32[]', space=smem, size = 0x4, offset = 0x4, fixed_abs, tag = 'smem constant byte address 0x4 - core index']
  #allocation1 [shape = 'u32[144,128]{1,0:T(1,128)}', space=vmem, size = 0x12000, scoped, tag = 'internal scratch']
  #allocation2 [shape = 'f32[18,18,8]{2,1,0:T(8,128)}', space=vmem, size = 0x36000, scoped, tag = 'scratch operand']
  %s0 = inlined_call_operand.vmem [shape: f32[14,14,8], index: 0, kind: input, shape index: {}]
  %s1 = inlined_call_operand.vmem [shape: f32[1,8], index: 1, kind: output, shape index: {}]
  %s2 = sld [smem:[#allocation0]]
  $region14: #{dropblock_from_mask.2} parent=0
    _
  %s4 = ssub.s32 1, %s2
  %s5 = scalar_select 0, %s4, %s2
  // Predicated region
  $region2: #{dropblock_from_mask.2} parent=0 // pred_check
    _
  $region3: #{dropblock_from_mask.2} parent=0 // pred_check_branch
    %7 = sbr.rel (0) target = $region5
  $region4: #{dropblock_from_mask.2} parent=0 // pred_region
    _
  $region5: #{dropblock_from_mask.2} parent=0 // pred_fallthru
    _
  %v8 = vld [vmem:[%s0] sm:$0xff]
  %v9 = vld [vmem:[%s0 + $0x8] sm:$0x3f]
  %v10 = vld [vmem:[%s0 + $0x10] sm:$0xff]
  %v11 = vld [vmem:[%s0 + $0x18] sm:$0x3f]
  %v12 = vld [vmem:[%s0 + $0x20] sm:$0xff]
  %v13 = vld [vmem:[%s0 + $0x28] sm:$0x3f]
  %v14 = vld [vmem:[%s0 + $0x30] sm:$0xff]
  %v15 = vld [vmem:[%s0 + $0x38] sm:$0x3f]
  %v16 = vld [vmem:[%s0 + $0x40] sm:$0xff]
  %v17 = vld [vmem:[%s0 + $0x48] sm:$0x3f]
  %v18 = vld [vmem:[%s0 + $0x50] sm:$0xff]
  %v19 = vld [vmem:[%s0 + $0x58] sm:$0x3f]
  %v20 = vld [vmem:[%s0 + $0x60] sm:$0xff]
  %v21 = vld [vmem:[%s0 + $0x68] sm:$0x3f]
  %v22 = vld [vmem:[%s0 + $0x70] sm:$0xff]
  %v23 = vld [vmem:[%s0 + $0x78] sm:$0x3f]
  %v24 = vld [vmem:[%s0 + $0x80] sm:$0xff]
  %v25 = vld [vmem:[%s0 + $0x88] sm:$0x3f]
  %v26 = vld [vmem:[%s0 + $0x90] sm:$0xff]
  %v27 = vld [vmem:[%s0 + $0x98] sm:$0x3f]
  %v28 = vld [vmem:[%s0 + $0xa0] sm:$0xff]
  %v29 = vld [vmem:[%s0 + $0xa8] sm:$0x3f]
  %v30 = vld [vmem:[%s0 + $0xb0] sm:$0xff]
  %v31 = vld [vmem:[%s0 + $0xb8] sm:$0x3f]
  %v32 = vld [vmem:[%s0 + $0xc0] sm:$0xff]
  %v33 = vld [vmem:[%s0 + $0xc8] sm:$0x3f]
  %v34 = vld [vmem:[%s0 + $0xd0] sm:$0xff]
  %v35 = vld [vmem:[%s0 + $0xd8] sm:$0x3f]
  %vm36 = vcmask 64512
  %37 = vst.msk [vmem:[#allocation2] sm:$0xff] %vm36, 0.0
  %38 = vst.msk [vmem:[#allocation2 + $0x8] sm:$0xff] %vm36, 0.0
  %vm39 = vcmask 58368
  %40 = vst.msk [vmem:[#allocation2 + $0x10] sm:$0x3] %vm39, 0.0
  %41 = vst.msk [vmem:[#allocation2 + $0x18] sm:$0xff] %vm36, 0.0
  %42 = vst.msk [vmem:[#allocation2 + $0x20] sm:$0xff] %vm36, 0.0
  %43 = vst.msk [vmem:[#allocation2 + $0x28] sm:$0x3] %vm39, 0.0
  %44 = vst.msk [vmem:[#allocation2 + $0x30] sm:$0xff] %vm36, 0.0
  %45 = vst.msk [vmem:[#allocation2 + $0x38] sm:$0xff] %vm36, 0.0
  %46 = vst.msk [vmem:[#allocation2 + $0x40] sm:$0x3] %vm39, 0.0
  %47 = vst.msk [vmem:[#allocation2 + $0x48] sm:$0xff] %vm36, 0.0
  %48 = vst.msk [vmem:[#allocation2 + $0x50] sm:$0xff] %vm36, 0.0
  %49 = vst.msk [vmem:[#allocation2 + $0x58] sm:$0x3] %vm39, 0.0
  %50 = vst.msk [vmem:[#allocation2 + $0x60] sm:$0xff] %vm36, 0.0
  %51 = vst.msk [vmem:[#allocation2 + $0x68] sm:$0xff] %vm36, 0.0
  %52 = vst.msk [vmem:[#allocation2 + $0x70] sm:$0x3] %vm39, 0.0
  %53 = vst.msk [vmem:[#allocation2 + $0x78] sm:$0xff] %vm36, 0.0
  %54 = vst.msk [vmem:[#allocation2 + $0x80] sm:$0xff] %vm36, 0.0
  %55 = vst.msk [vmem:[#allocation2 + $0x88] sm:$0x3] %vm39, 0.0
  %56 = vst.msk [vmem:[#allocation2 + $0x90] sm:$0xff] %vm36, 0.0
  %57 = vst.msk [vmem:[#allocation2 + $0x98] sm:$0xff] %vm36, 0.0
  %58 = vst.msk [vmem:[#allocation2 + $0xa0] sm:$0x3] %vm39, 0.0
  %59 = vst.msk [vmem:[#allocation2 + $0xa8] sm:$0xff] %vm36, 0.0
  %60 = vst.msk [vmem:[#allocation2 + $0xb0] sm:$0xff] %vm36, 0.0
  %61 = vst.msk [vmem:[#allocation2 + $0xb8] sm:$0x3] %vm39, 0.0
  %62 = vst.msk [vmem:[#allocation2 + $0xc0] sm:$0xff] %vm36, 0.0
  %63 = vst.msk [vmem:[#allocation2 + $0xc8] sm:$0xff] %vm36, 0.0
  %64 = vst.msk [vmem:[#allocation2 + $0xd0] sm:$0x3] %vm39, 0.0
  %65 = vst.msk [vmem:[#allocation2 + $0xd8] sm:$0xff] %vm36, 0.0
  %66 = vst.msk [vmem:[#allocation2 + $0xe0] sm:$0xff] %vm36, 0.0
  %67 = vst.msk [vmem:[#allocation2 + $0xe8] sm:$0x3] %vm39, 0.0
  %68 = vst.msk [vmem:[#allocation2 + $0xf0] sm:$0xff] %vm36, 0.0
  %69 = vst.msk [vmem:[#allocation2 + $0xf8] sm:$0xff] %vm36, 0.0
  %70 = vst.msk [vmem:[#allocation2 + $0x100] sm:$0x3] %vm39, 0.0
  %71 = vst.msk [vmem:[#allocation2 + $0x108] sm:$0xff] %vm36, 0.0
  %72 = vst.msk [vmem:[#allocation2 + $0x110] sm:$0xff] %vm36, 0.0
  %73 = vst.msk [vmem:[#allocation2 + $0x118] sm:$0x3] %vm39, 0.0
  %74 = vst.msk [vmem:[#allocation2 + $0x120] sm:$0xff] %vm36, 0.0
  %75 = vst.msk [vmem:[#allocation2 + $0x128] sm:$0xff] %vm36, 0.0
  %76 = vst.msk [vmem:[#allocation2 + $0x130] sm:$0x3] %vm39, 0.0
  %77 = vst.msk [vmem:[#allocation2 + $0x138] sm:$0xff] %vm36, 0.0
  %78 = vst.msk [vmem:[#allocation2 + $0x140] sm:$0xff] %vm36, 0.0
  %79 = vst.msk [vmem:[#allocation2 + $0x148] sm:$0x3] %vm39, 0.0
  %80 = vst.msk [vmem:[#allocation2 + $0x150] sm:$0xff] %vm36, 0.0
  %81 = vst.msk [vmem:[#allocation2 + $0x158] sm:$0xff] %vm36, 0.0
  %82 = vst.msk [vmem:[#allocation2 + $0x160] sm:$0x3] %vm39, 0.0
  %83 = vst.msk [vmem:[#allocation2 + $0x168] sm:$0xff] %vm36, 0.0
  %84 = vst.msk [vmem:[#allocation2 + $0x170] sm:$0xff] %vm36, 0.0
  %85 = vst.msk [vmem:[#allocation2 + $0x178] sm:$0x3] %vm39, 0.0
  %86 = vst.msk [vmem:[#allocation2 + $0x180] sm:$0xff] %vm36, 0.0
  %87 = vst.msk [vmem:[#allocation2 + $0x188] sm:$0xff] %vm36, 0.0
  %88 = vst.msk [vmem:[#allocation2 + $0x190] sm:$0x3] %vm39, 0.0
  %89 = vst.msk [vmem:[#allocation2 + $0x198] sm:$0xff] %vm36, 0.0
  %90 = vst.msk [vmem:[#allocation2 + $0x1a0] sm:$0xff] %vm36, 0.0
  %91 = vst.msk [vmem:[#allocation2 + $0x1a8] sm:$0x3] %vm39, 0.0
  %s92 = scalar_lea.vmem [#allocation2], 48
  %93 = vst.msk [vmem:[%s92 + $0x2] sm:$0xff] %vm36, %v8
  %vm94 = vcmask 62464
  %95 = vst.msk [vmem:[%s92 + $0xa] sm:$0x3f] %vm94, %v9
  %96 = vst.msk [vmem:[%s92 + $0x1a] sm:$0xff] %vm36, %v10
  %97 = vst.msk [vmem:[%s92 + $0x22] sm:$0x3f] %vm94, %v11
  %98 = vst.msk [vmem:[%s92 + $0x32] sm:$0xff] %vm36, %v12
  %99 = vst.msk [vmem:[%s92 + $0x3a] sm:$0x3f] %vm94, %v13
  %100 = vst.msk [vmem:[%s92 + $0x4a] sm:$0xff] %vm36, %v14
  %101 = vst.msk [vmem:[%s92 + $0x52] sm:$0x3f] %vm94, %v15
  %102 = vst.msk [vmem:[%s92 + $0x62] sm:$0xff] %vm36, %v16
  %103 = vst.msk [vmem:[%s92 + $0x6a] sm:$0x3f] %vm94, %v17
  %104 = vst.msk [vmem:[%s92 + $0x7a] sm:$0xff] %vm36, %v18
  %105 = vst.msk [vmem:[%s92 + $0x82] sm:$0x3f] %vm94, %v19
  %106 = vst.msk [vmem:[%s92 + $0x92] sm:$0xff] %vm36, %v20
  %107 = vst.msk [vmem:[%s92 + $0x9a] sm:$0x3f] %vm94, %v21
  %108 = vst.msk [vmem:[%s92 + $0xaa] sm:$0xff] %vm36, %v22
  %109 = vst.msk [vmem:[%s92 + $0xb2] sm:$0x3f] %vm94, %v23
  %110 = vst.msk [vmem:[%s92 + $0xc2] sm:$0xff] %vm36, %v24
  %111 = vst.msk [vmem:[%s92 + $0xca] sm:$0x3f] %vm94, %v25
  %112 = vst.msk [vmem:[%s92 + $0xda] sm:$0xff] %vm36, %v26
  %113 = vst.msk [vmem:[%s92 + $0xe2] sm:$0x3f] %vm94, %v27
  %114 = vst.msk [vmem:[%s92 + $0xf2] sm:$0xff] %vm36, %v28
  %115 = vst.msk [vmem:[%s92 + $0xfa] sm:$0x3f] %vm94, %v29
  %116 = vst.msk [vmem:[%s92 + $0x10a] sm:$0xff] %vm36, %v30
  %117 = vst.msk [vmem:[%s92 + $0x112] sm:$0x3f] %vm94, %v31
  %118 = vst.msk [vmem:[%s92 + $0x122] sm:$0xff] %vm36, %v32
  %119 = vst.msk [vmem:[%s92 + $0x12a] sm:$0x3f] %vm94, %v33
  %120 = vst.msk [vmem:[%s92 + $0x13a] sm:$0xff] %vm36, %v34
  %121 = vst.msk [vmem:[%s92 + $0x142] sm:$0x3f] %vm94, %v35
  %v122 = vld [vmem:[#allocation2] sm:$0xff]
  %v123 = vld [vmem:[#allocation2 + $0x8] sm:$0xff]
  %v124 = vld [vmem:[#allocation2 + $0x10] sm:$0x3]
  %v125 = vld [vmem:[#allocation2 + $0x18] sm:$0xff]
  %v126 = vld [vmem:[#allocation2 + $0x20] sm:$0xff]
  %v127 = vld [vmem:[#allocation2 + $0x28] sm:$0x3]
  %v128 = vld [vmem:[#allocation2 + $0x30] sm:$0xff]
  %v129 = vld [vmem:[#allocation2 + $0x38] sm:$0xff]
  %v130 = vld [vmem:[#allocation2 + $0x40] sm:$0x3]
  %v131 = vld [vmem:[#allocation2 + $0x48] sm:$0xff]
  %v132 = vld [vmem:[#allocation2 + $0x50] sm:$0xff]
  %v133 = vld [vmem:[#allocation2 + $0x58] sm:$0x3]
  %v134 = vld [vmem:[#allocation2 + $0x60] sm:$0xff]
  %v135 = vld [vmem:[#allocation2 + $0x68] sm:$0xff]
  %v136 = vld [vmem:[#allocation2 + $0x70] sm:$0x3]
  %v137 = vld [vmem:[#allocation2 + $0x78] sm:$0xff]
  %v138 = vld [vmem:[#allocation2 + $0x80] sm:$0xff]
  %v139 = vld [vmem:[#allocation2 + $0x88] sm:$0x3]
  %v140 = vld [vmem:[#allocation2 + $0x90] sm:$0xff]
  %v141 = vld [vmem:[#allocation2 + $0x98] sm:$0xff]
  %v142 = vld [vmem:[#allocation2 + $0xa0] sm:$0x3]
  %v143 = vld [vmem:[#allocation2 + $0xa8] sm:$0xff]
  %v144 = vld [vmem:[#allocation2 + $0xb0] sm:$0xff]
  %v145 = vld [vmem:[#allocation2 + $0xb8] sm:$0x3]
  %v146 = vld [vmem:[#allocation2 + $0xc0] sm:$0xff]
  %v147 = vld [vmem:[#allocation2 + $0xc8] sm:$0xff]
  %v148 = vld [vmem:[#allocation2 + $0xd0] sm:$0x3]
  %v149 = vld [vmem:[#allocation2 + $0xd8] sm:$0xff]
  %v150 = vld [vmem:[#allocation2 + $0xe0] sm:$0xff]
  %v151 = vld [vmem:[#allocation2 + $0xe8] sm:$0x3]
  %v152 = vld [vmem:[#allocation2 + $0xf0] sm:$0xff]
  %v153 = vld [vmem:[#allocation2 + $0xf8] sm:$0xff]
  %v154 = vld [vmem:[#allocation2 + $0x100] sm:$0x3]
  %v155 = vld [vmem:[#allocation2 + $0x108] sm:$0xff]
  %v156 = vld [vmem:[#allocation2 + $0x110] sm:$0xff]
  %v157 = vld [vmem:[#allocation2 + $0x118] sm:$0x3]
  %v158 = vld [vmem:[#allocation2 + $0x120] sm:$0xff]
  %v159 = vld [vmem:[#allocation2 + $0x128] sm:$0xff]
  %v160 = vld [vmem:[#allocation2 + $0x130] sm:$0x3]
  %v161 = vld [vmem:[#allocation2 + $0x138] sm:$0xff]
  %v162 = vld [vmem:[#allocation2 + $0x140] sm:$0xff]
  %v163 = vld [vmem:[#allocation2 + $0x148] sm:$0x3]
  %v164 = vld [vmem:[#allocation2 + $0x150] sm:$0xff]
  %v165 = vld [vmem:[#allocation2 + $0x158] sm:$0xff]
  %v166 = vld [vmem:[#allocation2 + $0x160] sm:$0x3]
  %v167 = vld [vmem:[#allocation2 + $0x168] sm:$0xff]
  %v168 = vld [vmem:[#allocation2 + $0x170] sm:$0xff]
  %v169 = vld [vmem:[#allocation2 + $0x178] sm:$0x3]
  %v170 = vld [vmem:[#allocation2 + $0x180] sm:$0xff]
  %v171 = vld [vmem:[#allocation2 + $0x188] sm:$0xff]
  %v172 = vld [vmem:[#allocation2 + $0x190] sm:$0x3]
  %v173 = vld [vmem:[#allocation2 + $0x198] sm:$0xff]
  %v174 = vld [vmem:[#allocation2 + $0x1a0] sm:$0xff]
  %v175 = vld [vmem:[#allocation2 + $0x1a8] sm:$0x3]
  %vm230 = vcmask 1046528
  %v231 = vrot.slane %v122, 1
  %v232 = vrot.slane %v123, 1
  %v233 = vsel %vm230, %v231, %v232
  %v234 = vrot.slane %v124, 1
  %v235 = vsel %vm230, %v232, %v234
  %v236 = vrot.slane %v125, 1
  %v237 = vrot.slane %v126, 1
  %v238 = vsel %vm230, %v236, %v237
  %v239 = vrot.slane %v127, 1
  %v240 = vsel %vm230, %v237, %v239
  %v241 = vrot.slane %v128, 1
  %v242 = vrot.slane %v129, 1
  %v243 = vsel %vm230, %v241, %v242
  %v244 = vrot.slane %v130, 1
  %v245 = vsel %vm230, %v242, %v244
  %v246 = vrot.slane %v131, 1
  %v247 = vrot.slane %v132, 1
  %v248 = vsel %vm230, %v246, %v247
  %v249 = vrot.slane %v133, 1
  %v250 = vsel %vm230, %v247, %v249
  %v251 = vrot.slane %v134, 1
  %v252 = vrot.slane %v135, 1
  %v253 = vsel %vm230, %v251, %v252
  %v254 = vrot.slane %v136, 1
  %v255 = vsel %vm230, %v252, %v254
  %v256 = vrot.slane %v137, 1
  %v257 = vrot.slane %v138, 1
  %v258 = vsel %vm230, %v256, %v257
  %v259 = vrot.slane %v139, 1
  %v260 = vsel %vm230, %v257, %v259
  %v261 = vrot.slane %v140, 1
  %v262 = vrot.slane %v141, 1
  %v263 = vsel %vm230, %v261, %v262
  %v264 = vrot.slane %v142, 1
  %v265 = vsel %vm230, %v262, %v264
  %v266 = vrot.slane %v143, 1
  %v267 = vrot.slane %v144, 1
  %v268 = vsel %vm230, %v266, %v267
  %v269 = vrot.slane %v145, 1
  %v270 = vsel %vm230, %v267, %v269
  %v271 = vrot.slane %v146, 1
  %v272 = vrot.slane %v147, 1
  %v273 = vsel %vm230, %v271, %v272
  %v274 = vrot.slane %v148, 1
  %v275 = vsel %vm230, %v272, %v274
  %v276 = vrot.slane %v149, 1
  %v277 = vrot.slane %v150, 1
  %v278 = vsel %vm230, %v276, %v277
  %v279 = vrot.slane %v151, 1
  %v280 = vsel %vm230, %v277, %v279
  %v281 = vrot.slane %v152, 1
  %v282 = vrot.slane %v153, 1
  %v283 = vsel %vm230, %v281, %v282
  %v284 = vrot.slane %v154, 1
  %v285 = vsel %vm230, %v282, %v284
  %v286 = vrot.slane %v155, 1
  %v287 = vrot.slane %v156, 1
  %v288 = vsel %vm230, %v286, %v287
  %v289 = vrot.slane %v157, 1
  %v290 = vsel %vm230, %v287, %v289
  %v291 = vrot.slane %v158, 1
  %v292 = vrot.slane %v159, 1
  %v293 = vsel %vm230, %v291, %v292
  %v294 = vrot.slane %v160, 1
  %v295 = vsel %vm230, %v292, %v294
  %v296 = vrot.slane %v161, 1
  %v297 = vrot.slane %v162, 1
  %v298 = vsel %vm230, %v296, %v297
  %v299 = vrot.slane %v163, 1
  %v300 = vsel %vm230, %v297, %v299
  %v301 = vrot.slane %v164, 1
  %v302 = vrot.slane %v165, 1
  %v303 = vsel %vm230, %v301, %v302
  %v304 = vrot.slane %v166, 1
  %v305 = vsel %vm230, %v302, %v304
  %v306 = vrot.slane %v167, 1
  %v307 = vrot.slane %v168, 1
  %v308 = vsel %vm230, %v306, %v307
  %v309 = vrot.slane %v169, 1
  %v310 = vsel %vm230, %v307, %v309
  %v311 = vrot.slane %v170, 1
  %v312 = vrot.slane %v171, 1
  %v313 = vsel %vm230, %v311, %v312
  %v314 = vrot.slane %v172, 1
  %v315 = vsel %vm230, %v312, %v314
  %v316 = vrot.slane %v173, 1
  %v317 = vrot.slane %v174, 1
  %v318 = vsel %vm230, %v316, %v317
  %v319 = vrot.slane %v175, 1
  %v320 = vsel %vm230, %v317, %v319
  %v357 = vmax.f32 %v122, %v233
  %v358 = vmax.f32 %v123, %v235
  %v359 = vmax.f32 %v125, %v238
  %v360 = vmax.f32 %v126, %v240
  %v361 = vmax.f32 %v128, %v243
  %v362 = vmax.f32 %v129, %v245
  %v363 = vmax.f32 %v131, %v248
  %v364 = vmax.f32 %v132, %v250
  %v365 = vmax.f32 %v134, %v253
  %v366 = vmax.f32 %v135, %v255
  %v367 = vmax.f32 %v137, %v258
  %v368 = vmax.f32 %v138, %v260
  %v369 = vmax.f32 %v140, %v263
  %v370 = vmax.f32 %v141, %v265
  %v371 = vmax.f32 %v143, %v268
  %v372 = vmax.f32 %v144, %v270
  %v373 = vmax.f32 %v146, %v273
  %v374 = vmax.f32 %v147, %v275
  %v375 = vmax.f32 %v149, %v278
  %v376 = vmax.f32 %v150, %v280
  %v377 = vmax.f32 %v152, %v283
  %v378 = vmax.f32 %v153, %v285
  %v379 = vmax.f32 %v155, %v288
  %v380 = vmax.f32 %v156, %v290
  %v381 = vmax.f32 %v158, %v293
  %v382 = vmax.f32 %v159, %v295
  %v383 = vmax.f32 %v161, %v298
  %v384 = vmax.f32 %v162, %v300
  %v385 = vmax.f32 %v164, %v303
  %v386 = vmax.f32 %v165, %v305
  %v387 = vmax.f32 %v167, %v308
  %v388 = vmax.f32 %v168, %v310
  %v389 = vmax.f32 %v170, %v313
  %v390 = vmax.f32 %v171, %v315
  %v391 = vmax.f32 %v173, %v318
  %v392 = vmax.f32 %v174, %v320
  %vm393 = vcmask 1045504
  %v394 = vrot.slane %v122, 2
  %v395 = vrot.slane %v123, 2
  %v396 = vsel %vm393, %v394, %v395
  %v397 = vrot.slane %v124, 2
  %v398 = vsel %vm393, %v395, %v397
  %v399 = vrot.slane %v125, 2
  %v400 = vrot.slane %v126, 2
  %v401 = vsel %vm393, %v399, %v400
  %v402 = vrot.slane %v127, 2
  %v403 = vsel %vm393, %v400, %v402
  %v404 = vrot.slane %v128, 2
  %v405 = vrot.slane %v129, 2
  %v406 = vsel %vm393, %v404, %v405
  %v407 = vrot.slane %v130, 2
  %v408 = vsel %vm393, %v405, %v407
  %v409 = vrot.slane %v131, 2
  %v410 = vrot.slane %v132, 2
  %v411 = vsel %vm393, %v409, %v410
  %v412 = vrot.slane %v133, 2
  %v413 = vsel %vm393, %v410, %v412
  %v414 = vrot.slane %v134, 2
  %v415 = vrot.slane %v135, 2
  %v416 = vsel %vm393, %v414, %v415
  %v417 = vrot.slane %v136, 2
  %v418 = vsel %vm393, %v415, %v417
  %v419 = vrot.slane %v137, 2
  %v420 = vrot.slane %v138, 2
  %v421 = vsel %vm393, %v419, %v420
  %v422 = vrot.slane %v139, 2
  %v423 = vsel %vm393, %v420, %v422
  %v424 = vrot.slane %v140, 2
  %v425 = vrot.slane %v141, 2
  %v426 = vsel %vm393, %v424, %v425
  %v427 = vrot.slane %v142, 2
  %v428 = vsel %vm393, %v425, %v427
  %v429 = vrot.slane %v143, 2
  %v430 = vrot.slane %v144, 2
  %v431 = vsel %vm393, %v429, %v430
  %v432 = vrot.slane %v145, 2
  %v433 = vsel %vm393, %v430, %v432
  %v434 = vrot.slane %v146, 2
  %v435 = vrot.slane %v147, 2
  %v436 = vsel %vm393, %v434, %v435
  %v437 = vrot.slane %v148, 2
  %v438 = vsel %vm393, %v435, %v437
  %v439 = vrot.slane %v149, 2
  %v440 = vrot.slane %v150, 2
  %v441 = vsel %vm393, %v439, %v440
  %v442 = vrot.slane %v151, 2
  %v443 = vsel %vm393, %v440, %v442
  %v444 = vrot.slane %v152, 2
  %v445 = vrot.slane %v153, 2
  %v446 = vsel %vm393, %v444, %v445
  %v447 = vrot.slane %v154, 2
  %v448 = vsel %vm393, %v445, %v447
  %v449 = vrot.slane %v155, 2
  %v450 = vrot.slane %v156, 2
  %v451 = vsel %vm393, %v449, %v450
  %v452 = vrot.slane %v157, 2
  %v453 = vsel %vm393, %v450, %v452
  %v454 = vrot.slane %v158, 2
  %v455 = vrot.slane %v159, 2
  %v456 = vsel %vm393, %v454, %v455
  %v457 = vrot.slane %v160, 2
  %v458 = vsel %vm393, %v455, %v457
  %v459 = vrot.slane %v161, 2
  %v460 = vrot.slane %v162, 2
  %v461 = vsel %vm393, %v459, %v460
  %v462 = vrot.slane %v163, 2
  %v463 = vsel %vm393, %v460, %v462
  %v464 = vrot.slane %v164, 2
  %v465 = vrot.slane %v165, 2
  %v466 = vsel %vm393, %v464, %v465
  %v467 = vrot.slane %v166, 2
  %v468 = vsel %vm393, %v465, %v467
  %v469 = vrot.slane %v167, 2
  %v470 = vrot.slane %v168, 2
  %v471 = vsel %vm393, %v469, %v470
  %v472 = vrot.slane %v169, 2
  %v473 = vsel %vm393, %v470, %v472
  %v474 = vrot.slane %v170, 2
  %v475 = vrot.slane %v171, 2
  %v476 = vsel %vm393, %v474, %v475
  %v477 = vrot.slane %v172, 2
  %v478 = vsel %vm393, %v475, %v477
  %v479 = vrot.slane %v173, 2
  %v480 = vrot.slane %v174, 2
  %v481 = vsel %vm393, %v479, %v480
  %v482 = vrot.slane %v175, 2
  %v483 = vsel %vm393, %v480, %v482
  %v520 = vmax.f32 %v357, %v396
  %v521 = vmax.f32 %v358, %v398
  %v522 = vmax.f32 %v359, %v401
  %v523 = vmax.f32 %v360, %v403
  %v524 = vmax.f32 %v361, %v406
  %v525 = vmax.f32 %v362, %v408
  %v526 = vmax.f32 %v363, %v411
  %v527 = vmax.f32 %v364, %v413
  %v528 = vmax.f32 %v365, %v416
  %v529 = vmax.f32 %v366, %v418
  %v530 = vmax.f32 %v367, %v421
  %v531 = vmax.f32 %v368, %v423
  %v532 = vmax.f32 %v369, %v426
  %v533 = vmax.f32 %v370, %v428
  %v534 = vmax.f32 %v371, %v431
  %v535 = vmax.f32 %v372, %v433
  %v536 = vmax.f32 %v373, %v436
  %v537 = vmax.f32 %v374, %v438
  %v538 = vmax.f32 %v375, %v441
  %v539 = vmax.f32 %v376, %v443
  %v540 = vmax.f32 %v377, %v446
  %v541 = vmax.f32 %v378, %v448
  %v542 = vmax.f32 %v379, %v451
  %v543 = vmax.f32 %v380, %v453
  %v544 = vmax.f32 %v381, %v456
  %v545 = vmax.f32 %v382, %v458
  %v546 = vmax.f32 %v383, %v461
  %v547 = vmax.f32 %v384, %v463
  %v548 = vmax.f32 %v385, %v466
  %v549 = vmax.f32 %v386, %v468
  %v550 = vmax.f32 %v387, %v471
  %v551 = vmax.f32 %v388, %v473
  %v552 = vmax.f32 %v389, %v476
  %v553 = vmax.f32 %v390, %v478
  %v554 = vmax.f32 %v391, %v481
  %v555 = vmax.f32 %v392, %v483
  %v556 = vmax.f32 %v520, %v522
  %v557 = vmax.f32 %v521, %v523
  %v558 = vmax.f32 %v522, %v524
  %v559 = vmax.f32 %v523, %v525
  %v560 = vmax.f32 %v524, %v526
  %v561 = vmax.f32 %v525, %v527
  %v562 = vmax.f32 %v526, %v528
  %v563 = vmax.f32 %v527, %v529
  %v564 = vmax.f32 %v528, %v530
  %v565 = vmax.f32 %v529, %v531
  %v566 = vmax.f32 %v530, %v532
  %v567 = vmax.f32 %v531, %v533
  %v568 = vmax.f32 %v532, %v534
  %v569 = vmax.f32 %v533, %v535
  %v570 = vmax.f32 %v534, %v536
  %v571 = vmax.f32 %v535, %v537
  %v572 = vmax.f32 %v536, %v538
  %v573 = vmax.f32 %v537, %v539
  %v574 = vmax.f32 %v538, %v540
  %v575 = vmax.f32 %v539, %v541
  %v576 = vmax.f32 %v540, %v542
  %v577 = vmax.f32 %v541, %v543
  %v578 = vmax.f32 %v542, %v544
  %v579 = vmax.f32 %v543, %v545
  %v580 = vmax.f32 %v544, %v546
  %v581 = vmax.f32 %v545, %v547
  %v582 = vmax.f32 %v546, %v548
  %v583 = vmax.f32 %v547, %v549
  %v584 = vmax.f32 %v548, %v550
  %v585 = vmax.f32 %v549, %v551
  %v586 = vmax.f32 %v550, %v552
  %v587 = vmax.f32 %v551, %v553
  %v588 = vmax.f32 %v556, %v524
  %v589 = vmax.f32 %v557, %v525
  %v590 = vmax.f32 %v558, %v526
  %v591 = vmax.f32 %v559, %v527
  %v592 = vmax.f32 %v560, %v528
  %v593 = vmax.f32 %v561, %v529
  %v594 = vmax.f32 %v562, %v530
  %v595 = vmax.f32 %v563, %v531
  %v596 = vmax.f32 %v564, %v532
  %v597 = vmax.f32 %v565, %v533
  %v598 = vmax.f32 %v566, %v534
  %v599 = vmax.f32 %v567, %v535
  %v600 = vmax.f32 %v568, %v536
  %v601 = vmax.f32 %v569, %v537
  %v602 = vmax.f32 %v570, %v538
  %v603 = vmax.f32 %v571, %v539
  %v604 = vmax.f32 %v572, %v540
  %v605 = vmax.f32 %v573, %v541
  %v606 = vmax.f32 %v574, %v542
  %v607 = vmax.f32 %v575, %v543
  %v608 = vmax.f32 %v576, %v544
  %v609 = vmax.f32 %v577, %v545
  %v610 = vmax.f32 %v578, %v546
  %v611 = vmax.f32 %v579, %v547
  %v612 = vmax.f32 %v580, %v548
  %v613 = vmax.f32 %v581, %v549
  %v614 = vmax.f32 %v582, %v550
  %v615 = vmax.f32 %v583, %v551
  %v616 = vmax.f32 %v584, %v552
  %v617 = vmax.f32 %v585, %v553
  %v618 = vmax.f32 %v586, %v554
  %v619 = vmax.f32 %v587, %v555
  %v620 = vsub.f32 1.0, %v588
  %v621 = vsub.f32 1.0, %v589
  %v622 = vsub.f32 1.0, %v590
  %v623 = vsub.f32 1.0, %v591
  %v624 = vsub.f32 1.0, %v592
  %v625 = vsub.f32 1.0, %v593
  %v626 = vsub.f32 1.0, %v594
  %v627 = vsub.f32 1.0, %v595
  %v628 = vsub.f32 1.0, %v596
  %v629 = vsub.f32 1.0, %v597
  %v630 = vsub.f32 1.0, %v598
  %v631 = vsub.f32 1.0, %v599
  %v632 = vsub.f32 1.0, %v600
  %v633 = vsub.f32 1.0, %v601
  %v634 = vsub.f32 1.0, %v602
  %v635 = vsub.f32 1.0, %v603
  %v636 = vsub.f32 1.0, %v604
  %v637 = vsub.f32 1.0, %v605
  %v638 = vsub.f32 1.0, %v606
  %v639 = vsub.f32 1.0, %v607
  %v640 = vsub.f32 1.0, %v608
  %v641 = vsub.f32 1.0, %v609
  %v642 = vsub.f32 1.0, %v610
  %v643 = vsub.f32 1.0, %v611
  %v644 = vsub.f32 1.0, %v612
  %v645 = vsub.f32 1.0, %v613
  %v646 = vsub.f32 1.0, %v614
  %v647 = vsub.f32 1.0, %v615
  %v648 = vsub.f32 1.0, %v616
  %v649 = vsub.f32 1.0, %v617
  %v650 = vsub.f32 1.0, %v618
  %v651 = vsub.f32 1.0, %v619
  %v652 = vsel %vm36, %v620, 0.0
  %v653 = vsel %vm36, %v622, 0.0
  %v654 = vadd.f32 %v652, %v653
  %v655 = vsel %vm36, %v624, 0.0
  %v656 = vadd.f32 %v654, %v655
  %v657 = vsel %vm36, %v626, 0.0
  %v658 = vadd.f32 %v656, %v657
  %v659 = vsel %vm36, %v628, 0.0
  %v660 = vadd.f32 %v658, %v659
  %v661 = vsel %vm36, %v630, 0.0
  %v662 = vadd.f32 %v660, %v661
  %v663 = vsel %vm36, %v632, 0.0
  %v664 = vadd.f32 %v662, %v663
  %v665 = vsel %vm36, %v634, 0.0
  %v666 = vadd.f32 %v664, %v665
  %v667 = vsel %vm36, %v636, 0.0
  %v668 = vadd.f32 %v666, %v667
  %v669 = vsel %vm36, %v638, 0.0
  %v670 = vadd.f32 %v668, %v669
  %v671 = vsel %vm36, %v640, 0.0
  %v672 = vadd.f32 %v670, %v671
  %v673 = vsel %vm36, %v642, 0.0
  %v674 = vadd.f32 %v672, %v673
  %v675 = vsel %vm36, %v644, 0.0
  %v676 = vadd.f32 %v674, %v675
  %v677 = vsel %vm36, %v646, 0.0
  %v678 = vadd.f32 %v676, %v677
  %v679 = vsel %vm36, %v648, 0.0
  %v680 = vadd.f32 %v678, %v679
  %v681 = vsel %vm36, %v650, 0.0
  %v682 = vadd.f32 %v680, %v681
  %v683 = vsel %vm36, %v621, 0.0
  %v684 = vsel %vm36, %v623, 0.0
  %v685 = vadd.f32 %v683, %v684
  %v686 = vsel %vm36, %v625, 0.0
  %v687 = vadd.f32 %v685, %v686
  %v688 = vsel %vm36, %v627, 0.0
  %v689 = vadd.f32 %v687, %v688
  %v690 = vsel %vm36, %v629, 0.0
  %v691 = vadd.f32 %v689, %v690
  %v692 = vsel %vm36, %v631, 0.0
  %v693 = vadd.f32 %v691, %v692
  %v694 = vsel %vm36, %v633, 0.0
  %v695 = vadd.f32 %v693, %v694
  %v696 = vsel %vm36, %v635, 0.0
  %v697 = vadd.f32 %v695, %v696
  %v698 = vsel %vm36, %v637, 0.0
  %v699 = vadd.f32 %v697, %v698
  %v700 = vsel %vm36, %v639, 0.0
  %v701 = vadd.f32 %v699, %v700
  %v702 = vsel %vm36, %v641, 0.0
  %v703 = vadd.f32 %v701, %v702
  %v704 = vsel %vm36, %v643, 0.0
  %v705 = vadd.f32 %v703, %v704
  %v706 = vsel %vm36, %v645, 0.0
  %v707 = vadd.f32 %v705, %v706
  %v708 = vsel %vm36, %v647, 0.0
  %v709 = vadd.f32 %v707, %v708
  %v710 = vsel %vm36, %v649, 0.0
  %v711 = vadd.f32 %v709, %v710
  %v712 = vsel %vm36, %v651, 0.0
  %v713 = vadd.f32 %v711, %v712
  %v714 = vsel %vm36, %v682, 0.0
  %v715 = vsel %vm36, %v713, 0.0
  %v716 = vadd.f32 %v714, %v715
  %v717 = vrot.slane %v716, 4
  %v718 = vadd.f32 %v716, %v717
  %v719 = vrot.slane %v718, 2
  %v720 = vadd.f32 %v718, %v719
  %v721 = vrot.slane %v720, 1
  %v722 = vadd.f32 %v720, %v721
  %vm723 = vcmask 57344
  %724 = vst.msk [vmem:[%s1] sm:$0x1] %vm723, %v722
  // Predicated region
  $region6: #{dropblock_from_mask.2} parent=0 // pred_check
    _
  $region7: #{dropblock_from_mask.2} parent=0 // pred_check_branch
    %726 = sbr.rel (0) target = $region9
  $region8: #{dropblock_from_mask.2} parent=0 // pred_region
    _
  $region9: #{dropblock_from_mask.2} parent=0 // pred_fallthru
    _
  // Predicated region
  $region10: #{dropblock_from_mask.2} parent=0 // pred_check
    _
  $region11: #{dropblock_from_mask.2} parent=0 // pred_check_branch
    %728 = sbr.rel (0) target = $region13
  $region12: #{dropblock_from_mask.2} parent=0 // pred_region
    _
  $region13: #{dropblock_from_mask.2} parent=0 // pred_fallthru
    _

// kernel: dropblock_from_mask.3
$region0: #{dropblock_from_mask.3}
  #allocation0 [shape = 'u32[]', space=smem, size = 0x4, offset = 0x4, fixed_abs, tag = 'smem constant byte address 0x4 - core index']
  #allocation1 [shape = 'u32[144,128]{1,0:T(1,128)}', space=vmem, size = 0x12000, scoped, tag = 'internal scratch']
  #allocation2 [shape = 'f32[18,18,8]{2,1,0:T(8,128)}', space=vmem, size = 0x36000, scoped, tag = 'scratch operand']
  #allocation3 [shape = 'f32[1]{0:T(128)S(6)}', space=smem, size = 0x200, scoped, tag = 'scoped memory for dropblock_from_mask.3']
  %s0 = inlined_call_operand.<no memory space> [shape: f32[1], index: 0, kind: input, shape index: {}]
  %s1 = inlined_call_operand.vmem [shape: f32[14,14,8], index: 1, kind: input, shape index: {}]
  %s2 = inlined_call_operand.vmem [shape: f32[16,16,8], index: 2, kind: input, shape index: {}]
  %s3 = inlined_call_operand.vmem [shape: f32[16,16,8], index: 3, kind: output, shape index: {}]
  %s4 = sld [smem:[#allocation0]]
  $region22: #{dropblock_from_mask.3} parent=0
    _
  %s6 = ssub.s32 1, %s4
  %s7 = scalar_select 0, %s6, %s4
  %8 = sst [smem:[#allocation3]] %s0
  // Predicated region
  $region2: #{dropblock_from_mask.3} parent=0 // pred_check
    _
  $region3: #{dropblock_from_mask.3} parent=0 // pred_check_branch
    %10 = sbr.rel (0) target = $region5
  $region4: #{dropblock_from_mask.3} parent=0 // pred_region
    _
  $region5: #{dropblock_from_mask.3} parent=0 // pred_fallthru
    _
  // Predicated region
  $region6: #{dropblock_from_mask.3} parent=0 // pred_check
    _
  $region7: #{dropblock_from_mask.3} parent=0 // pred_check_branch
    %12 = sbr.rel (0) target = $region9
  $region8: #{dropblock_from_mask.3} parent=0 // pred_region
    _
  $region9: #{dropblock_from_mask.3} parent=0 // pred_fallthru
    _
  // Predicated region
  $region10: #{dropblock_from_mask.3} parent=0 // pred_check
    _
  $region11: #{dropblock_from_mask.3} parent=0 // pred_check_branch
    %14 = sbr.rel (0) target = $region13
  $region12: #{dropblock_from_mask.3} parent=0 // pred_region
    _
  $region13: #{dropblock_from_mask.3} parent=0 // pred_fallthru
    _
  %v15 = vld [vmem:[%s1] sm:$0xff]
  %v16 = vld [vmem:[%s1 + $0x8] sm:$0x3f]
  %v17 = vld [vmem:[%s1 + $0x10] sm:$0xff]
  %v18 = vld [vmem:[%s1 + $0x18] sm:$0x3f]
  %v19 = vld [vmem:[%s1 + $0x20] sm:$0xff]
  %v20 = vld [vmem:[%s1 + $0x28] sm:$0x3f]
  %v21 = vld [vmem:[%s1 + $0x30] sm:$0xff]
  %v22 = vld [vmem:[%s1 + $0x38] sm:$0x3f]
  %v23 = vld [vmem:[%s1 + $0x40] sm:$0xff]
  %v24 = vld [vmem:[%s1 + $0x48] sm:$0x3f]
  %v25 = vld [vmem:[%s1 + $0x50] sm:$0xff]
  %v26 = vld [vmem:[%s1 + $0x58] sm:$0x3f]
  %v27 = vld [vmem:[%s1 + $0x60] sm:$0xff]
  %v28 = vld [vmem:[%s1 + $0x68] sm:$0x3f]
  %v29 = vld [vmem:[%s1 + $0x70] sm:$0xff]
  %v30 = vld [vmem:[%s1 + $0x78] sm:$0x3f]
  %v31 = vld [vmem:[%s1 + $0x80] sm:$0xff]
  %v32 = vld [vmem:[%s1 + $0x88] sm:$0x3f]
  %v33 = vld [vmem:[%s1 + $0x90] sm:$0xff]
  %v34 = vld [vmem:[%s1 + $0x98] sm:$0x3f]
  %v35 = vld [vmem:[%s1 + $0xa0] sm:$0xff]
  %v36 = vld [vmem:[%s1 + $0xa8] sm:$0x3f]
  %v37 = vld [vmem:[%s1 + $0xb0] sm:$0xff]
  %v38 = vld [vmem:[%s1 + $0xb8] sm:$0x3f]
  %v39 = vld [vmem:[%s1 + $0xc0] sm:$0xff]
  %v40 = vld [vmem:[%s1 + $0xc8] sm:$0x3f]
  %v41 = vld [vmem:[%s1 + $0xd0] sm:$0xff]
  %v42 = vld [vmem:[%s1 + $0xd8] sm:$0x3f]
  %vm43 = vcmask 64512
  %44 = vst.msk [vmem:[#allocation2] sm:$0xff] %vm43, 0.0
  %45 = vst.msk [vmem:[#allocation2 + $0x8] sm:$0xff] %vm43, 0.0
  %vm46 = vcmask 58368
  %47 = vst.msk [vmem:[#allocation2 + $0x10] sm:$0x3] %vm46, 0.0
  %48 = vst.msk [vmem:[#allocation2 + $0x18] sm:$0xff] %vm43, 0.0
  %49 = vst.msk [vmem:[#allocation2 + $0x20] sm:$0xff] %vm43, 0.0
  %50 = vst.msk [vmem:[#allocation2 + $0x28] sm:$0x3] %vm46, 0.0
  %51 = vst.msk [vmem:[#allocation2 + $0x30] sm:$0xff] %vm43, 0.0
  %52 = vst.msk [vmem:[#allocation2 + $0x38] sm:$0xff] %vm43, 0.0
  %53 = vst.msk [vmem:[#allocation2 + $0x40] sm:$0x3] %vm46, 0.0
  %54 = vst.msk [vmem:[#allocation2 + $0x48] sm:$0xff] %vm43, 0.0
  %55 = vst.msk [vmem:[#allocation2 + $0x50] sm:$0xff] %vm43, 0.0
  %56 = vst.msk [vmem:[#allocation2 + $0x58] sm:$0x3] %vm46, 0.0
  %57 = vst.msk [vmem:[#allocation2 + $0x60] sm:$0xff] %vm43, 0.0
  %58 = vst.msk [vmem:[#allocation2 + $0x68] sm:$0xff] %vm43, 0.0
  %59 = vst.msk [vmem:[#allocation2 + $0x70] sm:$0x3] %vm46, 0.0
  %60 = vst.msk [vmem:[#allocation2 + $0x78] sm:$0xff] %vm43, 0.0
  %61 = vst.msk [vmem:[#allocation2 + $0x80] sm:$0xff] %vm43, 0.0
  %62 = vst.msk [vmem:[#allocation2 + $0x88] sm:$0x3] %vm46, 0.0
  %63 = vst.msk [vmem:[#allocation2 + $0x90] sm:$0xff] %vm43, 0.0
  %64 = vst.msk [vmem:[#allocation2 + $0x98] sm:$0xff] %vm43, 0.0
  %65 = vst.msk [vmem:[#allocation2 + $0xa0] sm:$0x3] %vm46, 0.0
  %66 = vst.msk [vmem:[#allocation2 + $0xa8] sm:$0xff] %vm43, 0.0
  %67 = vst.msk [vmem:[#allocation2 + $0xb0] sm:$0xff] %vm43, 0.0
  %68 = vst.msk [vmem:[#allocation2 + $0xb8] sm:$0x3] %vm46, 0.0
  %69 = vst.msk [vmem:[#allocation2 + $0xc0] sm:$0xff] %vm43, 0.0
  %70 = vst.msk [vmem:[#allocation2 + $0xc8] sm:$0xff] %vm43, 0.0
  %71 = vst.msk [vmem:[#allocation2 + $0xd0] sm:$0x3] %vm46, 0.0
  %72 = vst.msk [vmem:[#allocation2 + $0xd8] sm:$0xff] %vm43, 0.0
  %73 = vst.msk [vmem:[#allocation2 + $0xe0] sm:$0xff] %vm43, 0.0
  %74 = vst.msk [vmem:[#allocation2 + $0xe8] sm:$0x3] %vm46, 0.0
  %75 = vst.msk [vmem:[#allocation2 + $0xf0] sm:$0xff] %vm43, 0.0
  %76 = vst.msk [vmem:[#allocation2 + $0xf8] sm:$0xff] %vm43, 0.0
  %77 = vst.msk [vmem:[#allocation2 + $0x100] sm:$0x3] %vm46, 0.0
  %78 = vst.msk [vmem:[#allocation2 + $0x108] sm:$0xff] %vm43, 0.0
  %79 = vst.msk [vmem:[#allocation2 + $0x110] sm:$0xff] %vm43, 0.0
  %80 = vst.msk [vmem:[#allocation2 + $0x118] sm:$0x3] %vm46, 0.0
  %81 = vst.msk [vmem:[#allocation2 + $0x120] sm:$0xff] %vm43, 0.0
  %82 = vst.msk [vmem:[#allocation2 + $0x128] sm:$0xff] %vm43, 0.0
  %83 = vst.msk [vmem:[#allocation2 + $0x130] sm:$0x3] %vm46, 0.0
  %84 = vst.msk [vmem:[#allocation2 + $0x138] sm:$0xff] %vm43, 0.0
  %85 = vst.msk [vmem:[#allocation2 + $0x140] sm:$0xff] %vm43, 0.0
  %86 = vst.msk [vmem:[#allocation2 + $0x148] sm:$0x3] %vm46, 0.0
  %87 = vst.msk [vmem:[#allocation2 + $0x150] sm:$0xff] %vm43, 0.0
  %88 = vst.msk [vmem:[#allocation2 + $0x158] sm:$0xff] %vm43, 0.0
  %89 = vst.msk [vmem:[#allocation2 + $0x160] sm:$0x3] %vm46, 0.0
  %90 = vst.msk [vmem:[#allocation2 + $0x168] sm:$0xff] %vm43, 0.0
  %91 = vst.msk [vmem:[#allocation2 + $0x170] sm:$0xff] %vm43, 0.0
  %92 = vst.msk [vmem:[#allocation2 + $0x178] sm:$0x3] %vm46, 0.0
  %93 = vst.msk [vmem:[#allocation2 + $0x180] sm:$0xff] %vm43, 0.0
  %94 = vst.msk [vmem:[#allocation2 + $0x188] sm:$0xff] %vm43, 0.0
  %95 = vst.msk [vmem:[#allocation2 + $0x190] sm:$0x3] %vm46, 0.0
  %96 = vst.msk [vmem:[#allocation2 + $0x198] sm:$0xff] %vm43, 0.0
  %97 = vst.msk [vmem:[#allocation2 + $0x1a0] sm:$0xff] %vm43, 0.0
  %98 = vst.msk [vmem:[#allocation2 + $0x1a8] sm:$0x3] %vm46, 0.0
  %s99 = scalar_lea.vmem [#allocation2], 48
  %100 = vst.msk [vmem:[%s99 + $0x2] sm:$0xff] %vm43, %v15
  %vm101 = vcmask 62464
  %102 = vst.msk [vmem:[%s99 + $0xa] sm:$0x3f] %vm101, %v16
  %103 = vst.msk [vmem:[%s99 + $0x1a] sm:$0xff] %vm43, %v17
  %104 = vst.msk [vmem:[%s99 + $0x22] sm:$0x3f] %vm101, %v18
  %105 = vst.msk [vmem:[%s99 + $0x32] sm:$0xff] %vm43, %v19
  %106 = vst.msk [vmem:[%s99 + $0x3a] sm:$0x3f] %vm101, %v20
  %107 = vst.msk [vmem:[%s99 + $0x4a] sm:$0xff] %vm43, %v21
  %108 = vst.msk [vmem:[%s99 + $0x52] sm:$0x3f] %vm101, %v22
  %109 = vst.msk [vmem:[%s99 + $0x62] sm:$0xff] %vm43, %v23
  %110 = vst.msk [vmem:[%s99 + $0x6a] sm:$0x3f] %vm101, %v24
  %111 = vst.msk [vmem:[%s99 + $0x7a] sm:$0xff] %vm43, %v25
  %112 = vst.msk [vmem:[%s99 + $0x82] sm:$0x3f] %vm101, %v26
  %113 = vst.msk [vmem:[%s99 + $0x92] sm:$0xff] %vm43, %v27
  %114 = vst.msk [vmem:[%s99 + $0x9a] sm:$0x3f] %vm101, %v28
  %115 = vst.msk [vmem:[%s99 + $0xaa] sm:$0xff] %vm43, %v29
  %116 = vst.msk [vmem:[%s99 + $0xb2] sm:$0x3f] %vm101, %v30
  %117 = vst.msk [vmem:[%s99 + $0xc2] sm:$0xff] %vm43, %v31
  %118 = vst.msk [vmem:[%s99 + $0xca] sm:$0x3f] %vm101, %v32
  %119 = vst.msk [vmem:[%s99 + $0xda] sm:$0xff] %vm43, %v33
  %120 = vst.msk [vmem:[%s99 + $0xe2] sm:$0x3f] %vm101, %v34
  %121 = vst.msk [vmem:[%s99 + $0xf2] sm:$0xff] %vm43, %v35
  %122 = vst.msk [vmem:[%s99 + $0xfa] sm:$0x3f] %vm101, %v36
  %123 = vst.msk [vmem:[%s99 + $0x10a] sm:$0xff] %vm43, %v37
  %124 = vst.msk [vmem:[%s99 + $0x112] sm:$0x3f] %vm101, %v38
  %125 = vst.msk [vmem:[%s99 + $0x122] sm:$0xff] %vm43, %v39
  %126 = vst.msk [vmem:[%s99 + $0x12a] sm:$0x3f] %vm101, %v40
  %127 = vst.msk [vmem:[%s99 + $0x13a] sm:$0xff] %vm43, %v41
  %128 = vst.msk [vmem:[%s99 + $0x142] sm:$0x3f] %vm101, %v42
  %v129 = vld [vmem:[#allocation2] sm:$0xff]
  %v130 = vld [vmem:[#allocation2 + $0x8] sm:$0xff]
  %v131 = vld [vmem:[#allocation2 + $0x10] sm:$0x3]
  %v132 = vld [vmem:[#allocation2 + $0x18] sm:$0xff]
  %v133 = vld [vmem:[#allocation2 + $0x20] sm:$0xff]
  %v134 = vld [vmem:[#allocation2 + $0x28] sm:$0x3]
  %v135 = vld [vmem:[#allocation2 + $0x30] sm:$0xff]
  %v136 = vld [vmem:[#allocation2 + $0x38] sm:$0xff]
  %v137 = vld [vmem:[#allocation2 + $0x40] sm:$0x3]
  %v138 = vld [vmem:[#allocation2 + $0x48] sm:$0xff]
  %v139 = vld [vmem:[#allocation2 + $0x50] sm:$0xff]
  %v140 = vld [vmem:[#allocation2 + $0x58] sm:$0x3]
  %v141 = vld [vmem:[#allocation2 + $0x60] sm:$0xff]
  %v142 = vld [vmem:[#allocation2 + $0x68] sm:$0xff]
  %v143 = vld [vmem:[#allocation2 + $0x70] sm:$0x3]
  %v144 = vld [vmem:[#allocation2 + $0x78] sm:$0xff]
  %v145 = vld [vmem:[#allocation2 + $0x80] sm:$0xff]
  %v146 = vld [vmem:[#allocation2 + $0x88] sm:$0x3]
  %v147 = vld [vmem:[#allocation2 + $0x90] sm:$0xff]
  %v148 = vld [vmem:[#allocation2 + $0x98] sm:$0xff]
  %v149 = vld [vmem:[#allocation2 + $0xa0] sm:$0x3]
  %v150 = vld [vmem:[#allocation2 + $0xa8] sm:$0xff]
  %v151 = vld [vmem:[#allocation2 + $0xb0] sm:$0xff]
  %v152 = vld [vmem:[#allocation2 + $0xb8] sm:$0x3]
  %v153 = vld [vmem:[#allocation2 + $0xc0] sm:$0xff]
  %v154 = vld [vmem:[#allocation2 + $0xc8] sm:$0xff]
  %v155 = vld [vmem:[#allocation2 + $0xd0] sm:$0x3]
  %v156 = vld [vmem:[#allocation2 + $0xd8] sm:$0xff]
  %v157 = vld [vmem:[#allocation2 + $0xe0] sm:$0xff]
  %v158 = vld [vmem:[#allocation2 + $0xe8] sm:$0x3]
  %v159 = vld [vmem:[#allocation2 + $0xf0] sm:$0xff]
  %v160 = vld [vmem:[#allocation2 + $0xf8] sm:$0xff]
  %v161 = vld [vmem:[#allocation2 + $0x100] sm:$0x3]
  %v162 = vld [vmem:[#allocation2 + $0x108] sm:$0xff]
  %v163 = vld [vmem:[#allocation2 + $0x110] sm:$0xff]
  %v164 = vld [vmem:[#allocation2 + $0x118] sm:$0x3]
  %v165 = vld [vmem:[#allocation2 + $0x120] sm:$0xff]
  %v166 = vld [vmem:[#allocation2 + $0x128] sm:$0xff]
  %v167 = vld [vmem:[#allocation2 + $0x130] sm:$0x3]
  %v168 = vld [vmem:[#allocation2 + $0x138] sm:$0xff]
  %v169 = vld [vmem:[#allocation2 + $0x140] sm:$0xff]
  %v170 = vld [vmem:[#allocation2 + $0x148] sm:$0x3]
  %v171 = vld [vmem:[#allocation2 + $0x150] sm:$0xff]
  %v172 = vld [vmem:[#allocation2 + $0x158] sm:$0xff]
  %v173 = vld [vmem:[#allocation2 + $0x160] sm:$0x3]
  %v174 = vld [vmem:[#allocation2 + $0x168] sm:$0xff]
  %v175 = vld [vmem:[#allocation2 + $0x170] sm:$0xff]
  %v176 = vld [vmem:[#allocation2 + $0x178] sm:$0x3]
  %v177 = vld [vmem:[#allocation2 + $0x180] sm:$0xff]
  %v178 = vld [vmem:[#allocation2 + $0x188] sm:$0xff]
  %v179 = vld [vmem:[#allocation2 + $0x190] sm:$0x3]
  %v180 = vld [vmem:[#allocation2 + $0x198] sm:$0xff]
  %v181 = vld [vmem:[#allocation2 + $0x1a0] sm:$0xff]
  %v182 = vld [vmem:[#allocation2 + $0x1a8] sm:$0x3]
  %vm237 = vcmask 1046528
  %v238 = vrot.slane %v129, 1
  %v239 = vrot.slane %v130, 1
  %v240 = vsel %vm237, %v238, %v239
  %v241 = vrot.slane %v131, 1
  %v242 = vsel %vm237, %v239, %v241
  %v243 = vrot.slane %v132, 1
  %v244 = vrot.slane %v133, 1
  %v245 = vsel %vm237, %v243, %v244
  %v246 = vrot.slane %v134, 1
  %v247 = vsel %vm237, %v244, %v246
  %v248 = vrot.slane %v135, 1
  %v249 = vrot.slane %v136, 1
  %v250 = vsel %vm237, %v248, %v249
  %v251 = vrot.slane %v137, 1
  %v252 = vsel %vm237, %v249, %v251
  %v253 = vrot.slane %v138, 1
  %v254 = vrot.slane %v139, 1
  %v255 = vsel %vm237, %v253, %v254
  %v256 = vrot.slane %v140, 1
  %v257 = vsel %vm237, %v254, %v256
  %v258 = vrot.slane %v141, 1
  %v259 = vrot.slane %v142, 1
  %v260 = vsel %vm237, %v258, %v259
  %v261 = vrot.slane %v143, 1
  %v262 = vsel %vm237, %v259, %v261
  %v263 = vrot.slane %v144, 1
  %v264 = vrot.slane %v145, 1
  %v265 = vsel %vm237, %v263, %v264
  %v266 = vrot.slane %v146, 1
  %v267 = vsel %vm237, %v264, %v266
  %v268 = vrot.slane %v147, 1
  %v269 = vrot.slane %v148, 1
  %v270 = vsel %vm237, %v268, %v269
  %v271 = vrot.slane %v149, 1
  %v272 = vsel %vm237, %v269, %v271
  %v273 = vrot.slane %v150, 1
  %v274 = vrot.slane %v151, 1
  %v275 = vsel %vm237, %v273, %v274
  %v276 = vrot.slane %v152, 1
  %v277 = vsel %vm237, %v274, %v276
  %v278 = vrot.slane %v153, 1
  %v279 = vrot.slane %v154, 1
  %v280 = vsel %vm237, %v278, %v279
  %v281 = vrot.slane %v155, 1
  %v282 = vsel %vm237, %v279, %v281
  %v283 = vrot.slane %v156, 1
  %v284 = vrot.slane %v157, 1
  %v285 = vsel %vm237, %v283, %v284
  %v286 = vrot.slane %v158, 1
  %v287 = vsel %vm237, %v284, %v286
  %v288 = vrot.slane %v159, 1
  %v289 = vrot.slane %v160, 1
  %v290 = vsel %vm237, %v288, %v289
  %v291 = vrot.slane %v161, 1
  %v292 = vsel %vm237, %v289, %v291
  %v293 = vrot.slane %v162, 1
  %v294 = vrot.slane %v163, 1
  %v295 = vsel %vm237, %v293, %v294
  %v296 = vrot.slane %v164, 1
  %v297 = vsel %vm237, %v294, %v296
  %v298 = vrot.slane %v165, 1
  %v299 = vrot.slane %v166, 1
  %v300 = vsel %vm237, %v298, %v299
  %v301 = vrot.slane %v167, 1
  %v302 = vsel %vm237, %v299, %v301
  %v303 = vrot.slane %v168, 1
  %v304 = vrot.slane %v169, 1
  %v305 = vsel %vm237, %v303, %v304
  %v306 = vrot.slane %v170, 1
  %v307 = vsel %vm237, %v304, %v306
  %v308 = vrot.slane %v171, 1
  %v309 = vrot.slane %v172, 1
  %v310 = vsel %vm237, %v308, %v309
  %v311 = vrot.slane %v173, 1
  %v312 = vsel %vm237, %v309, %v311
  %v313 = vrot.slane %v174, 1
  %v314 = vrot.slane %v175, 1
  %v315 = vsel %vm237, %v313, %v314
  %v316 = vrot.slane %v176, 1
  %v317 = vsel %vm237, %v314, %v316
  %v318 = vrot.slane %v177, 1
  %v319 = vrot.slane %v178, 1
  %v320 = vsel %vm237, %v318, %v319
  %v321 = vrot.slane %v179, 1
  %v322 = vsel %vm237, %v319, %v321
  %v323 = vrot.slane %v180, 1
  %v324 = vrot.slane %v181, 1
  %v325 = vsel %vm237, %v323, %v324
  %v326 = vrot.slane %v182, 1
  %v327 = vsel %vm237, %v324, %v326
  %v364 = vmax.f32 %v129, %v240
  %v365 = vmax.f32 %v130, %v242
  %v366 = vmax.f32 %v132, %v245
  %v367 = vmax.f32 %v133, %v247
  %v368 = vmax.f32 %v135, %v250
  %v369 = vmax.f32 %v136, %v252
  %v370 = vmax.f32 %v138, %v255
  %v371 = vmax.f32 %v139, %v257
  %v372 = vmax.f32 %v141, %v260
  %v373 = vmax.f32 %v142, %v262
  %v374 = vmax.f32 %v144, %v265
  %v375 = vmax.f32 %v145, %v267
  %v376 = vmax.f32 %v147, %v270
  %v377 = vmax.f32 %v148, %v272
  %v378 = vmax.f32 %v150, %v275
  %v379 = vmax.f32 %v151, %v277
  %v380 = vmax.f32 %v153, %v280
  %v381 = vmax.f32 %v154, %v282
  %v382 = vmax.f32 %v156, %v285
  %v383 = vmax.f32 %v157, %v287
  %v384 = vmax.f32 %v159, %v290
  %v385 = vmax.f32 %v160, %v292
  %v386 = vmax.f32 %v162, %v295
  %v387 = vmax.f32 %v163, %v297
  %v388 = vmax.f32 %v165, %v300
  %v389 = vmax.f32 %v166, %v302
  %v390 = vmax.f32 %v168, %v305
  %v391 = vmax.f32 %v169, %v307
  %v392 = vmax.f32 %v171, %v310
  %v393 = vmax.f32 %v172, %v312
  %v394 = vmax.f32 %v174, %v315
  %v395 = vmax.f32 %v175, %v317
  %v396 = vmax.f32 %v177, %v320
  %v397 = vmax.f32 %v178, %v322
  %v398 = vmax.f32 %v180, %v325
  %v399 = vmax.f32 %v181, %v327
  %vm400 = vcmask 1045504
  %v401 = vrot.slane %v129, 2
  %v402 = vrot.slane %v130, 2
  %v403 = vsel %vm400, %v401, %v402
  %v404 = vrot.slane %v131, 2
  %v405 = vsel %vm400, %v402, %v404
  %v406 = vrot.slane %v132, 2
  %v407 = vrot.slane %v133, 2
  %v408 = vsel %vm400, %v406, %v407
  %v409 = vrot.slane %v134, 2
  %v410 = vsel %vm400, %v407, %v409
  %v411 = vrot.slane %v135, 2
  %v412 = vrot.slane %v136, 2
  %v413 = vsel %vm400, %v411, %v412
  %v414 = vrot.slane %v137, 2
  %v415 = vsel %vm400, %v412, %v414
  %v416 = vrot.slane %v138, 2
  %v417 = vrot.slane %v139, 2
  %v418 = vsel %vm400, %v416, %v417
  %v419 = vrot.slane %v140, 2
  %v420 = vsel %vm400, %v417, %v419
  %v421 = vrot.slane %v141, 2
  %v422 = vrot.slane %v142, 2
  %v423 = vsel %vm400, %v421, %v422
  %v424 = vrot.slane %v143, 2
  %v425 = vsel %vm400, %v422, %v424
  %v426 = vrot.slane %v144, 2
  %v427 = vrot.slane %v145, 2
  %v428 = vsel %vm400, %v426, %v427
  %v429 = vrot.slane %v146, 2
  %v430 = vsel %vm400, %v427, %v429
  %v431 = vrot.slane %v147, 2
  %v432 = vrot.slane %v148, 2
  %v433 = vsel %vm400, %v431, %v432
  %v434 = vrot.slane %v149, 2
  %v435 = vsel %vm400, %v432, %v434
  %v436 = vrot.slane %v150, 2
  %v437 = vrot.slane %v151, 2
  %v438 = vsel %vm400, %v436, %v437
  %v439 = vrot.slane %v152, 2
  %v440 = vsel %vm400, %v437, %v439
  %v441 = vrot.slane %v153, 2
  %v442 = vrot.slane %v154, 2
  %v443 = vsel %vm400, %v441, %v442
  %v444 = vrot.slane %v155, 2
  %v445 = vsel %vm400, %v442, %v444
  %v446 = vrot.slane %v156, 2
  %v447 = vrot.slane %v157, 2
  %v448 = vsel %vm400, %v446, %v447
  %v449 = vrot.slane %v158, 2
  %v450 = vsel %vm400, %v447, %v449
  %v451 = vrot.slane %v159, 2
  %v452 = vrot.slane %v160, 2
  %v453 = vsel %vm400, %v451, %v452
  %v454 = vrot.slane %v161, 2
  %v455 = vsel %vm400, %v452, %v454
  %v456 = vrot.slane %v162, 2
  %v457 = vrot.slane %v163, 2
  %v458 = vsel %vm400, %v456, %v457
  %v459 = vrot.slane %v164, 2
  %v460 = vsel %vm400, %v457, %v459
  %v461 = vrot.slane %v165, 2
  %v462 = vrot.slane %v166, 2
  %v463 = vsel %vm400, %v461, %v462
  %v464 = vrot.slane %v167, 2
  %v465 = vsel %vm400, %v462, %v464
  %v466 = vrot.slane %v168, 2
  %v467 = vrot.slane %v169, 2
  %v468 = vsel %vm400, %v466, %v467
  %v469 = vrot.slane %v170, 2
  %v470 = vsel %vm400, %v467, %v469
  %v471 = vrot.slane %v171, 2
  %v472 = vrot.slane %v172, 2
  %v473 = vsel %vm400, %v471, %v472
  %v474 = vrot.slane %v173, 2
  %v475 = vsel %vm400, %v472, %v474
  %v476 = vrot.slane %v174, 2
  %v477 = vrot.slane %v175, 2
  %v478 = vsel %vm400, %v476, %v477
  %v479 = vrot.slane %v176, 2
  %v480 = vsel %vm400, %v477, %v479
  %v481 = vrot.slane %v177, 2
  %v482 = vrot.slane %v178, 2
  %v483 = vsel %vm400, %v481, %v482
  %v484 = vrot.slane %v179, 2
  %v485 = vsel %vm400, %v482, %v484
  %v486 = vrot.slane %v180, 2
  %v487 = vrot.slane %v181, 2
  %v488 = vsel %vm400, %v486, %v487
  %v489 = vrot.slane %v182, 2
  %v490 = vsel %vm400, %v487, %v489
  %v527 = vmax.f32 %v364, %v403
  %v528 = vmax.f32 %v365, %v405
  %v529 = vmax.f32 %v366, %v408
  %v530 = vmax.f32 %v367, %v410
  %v531 = vmax.f32 %v368, %v413
  %v532 = vmax.f32 %v369, %v415
  %v533 = vmax.f32 %v370, %v418
  %v534 = vmax.f32 %v371, %v420
  %v535 = vmax.f32 %v372, %v423
  %v536 = vmax.f32 %v373, %v425
  %v537 = vmax.f32 %v374, %v428
  %v538 = vmax.f32 %v375, %v430
  %v539 = vmax.f32 %v376, %v433
  %v540 = vmax.f32 %v377, %v435
  %v541 = vmax.f32 %v378, %v438
  %v542 = vmax.f32 %v379, %v440
  %v543 = vmax.f32 %v380, %v443
  %v544 = vmax.f32 %v381, %v445
  %v545 = vmax.f32 %v382, %v448
  %v546 = vmax.f32 %v383, %v450
  %v547 = vmax.f32 %v384, %v453
  %v548 = vmax.f32 %v385, %v455
  %v549 = vmax.f32 %v386, %v458
  %v550 = vmax.f32 %v387, %v460
  %v551 = vmax.f32 %v388, %v463
  %v552 = vmax.f32 %v389, %v465
  %v553 = vmax.f32 %v390, %v468
  %v554 = vmax.f32 %v391, %v470
  %v555 = vmax.f32 %v392, %v473
  %v556 = vmax.f32 %v393, %v475
  %v557 = vmax.f32 %v394, %v478
  %v558 = vmax.f32 %v395, %v480
  %v559 = vmax.f32 %v396, %v483
  %v560 = vmax.f32 %v397, %v485
  %v561 = vmax.f32 %v398, %v488
  %v562 = vmax.f32 %v399, %v490
  %v563 = vmax.f32 %v527, %v529
  %v564 = vmax.f32 %v528, %v530
  %v565 = vmax.f32 %v529, %v531
  %v566 = vmax.f32 %v530, %v532
  %v567 = vmax.f32 %v531, %v533
  %v568 = vmax.f32 %v532, %v534
  %v569 = vmax.f32 %v533, %v535
  %v570 = vmax.f32 %v534, %v536
  %v571 = vmax.f32 %v535, %v537
  %v572 = vmax.f32 %v536, %v538
  %v573 = vmax.f32 %v537, %v539
  %v574 = vmax.f32 %v538, %v540
  %v575 = vmax.f32 %v539, %v541
  %v576 = vmax.f32 %v540, %v542
  %v577 = vmax.f32 %v541, %v543
  %v578 = vmax.f32 %v542, %v544
  %v579 = vmax.f32 %v543, %v545
  %v580 = vmax.f32 %v544, %v546
  %v581 = vmax.f32 %v545, %v547
  %v582 = vmax.f32 %v546, %v548
  %v583 = vmax.f32 %v547, %v549
  %v584 = vmax.f32 %v548, %v550
  %v585 = vmax.f32 %v549, %v551
  %v586 = vmax.f32 %v550, %v552
  %v587 = vmax.f32 %v551, %v553
  %v588 = vmax.f32 %v552, %v554
  %v589 = vmax.f32 %v553, %v555
  %v590 = vmax.f32 %v554, %v556
  %v591 = vmax.f32 %v555, %v557
  %v592 = vmax.f32 %v556, %v558
  %v593 = vmax.f32 %v557, %v559
  %v594 = vmax.f32 %v558, %v560
  %v595 = vmax.f32 %v563, %v531
  %v596 = vmax.f32 %v564, %v532
  %v597 = vmax.f32 %v565, %v533
  %v598 = vmax.f32 %v566, %v534
  %v599 = vmax.f32 %v567, %v535
  %v600 = vmax.f32 %v568, %v536
  %v601 = vmax.f32 %v569, %v537
  %v602 = vmax.f32 %v570, %v538
  %v603 = vmax.f32 %v571, %v539
  %v604 = vmax.f32 %v572, %v540
  %v605 = vmax.f32 %v573, %v541
  %v606 = vmax.f32 %v574, %v542
  %v607 = vmax.f32 %v575, %v543
  %v608 = vmax.f32 %v576, %v544
  %v609 = vmax.f32 %v577, %v545
  %v610 = vmax.f32 %v578, %v546
  %v611 = vmax.f32 %v579, %v547
  %v612 = vmax.f32 %v580, %v548
  %v613 = vmax.f32 %v581, %v549
  %v614 = vmax.f32 %v582, %v550
  %v615 = vmax.f32 %v583, %v551
  %v616 = vmax.f32 %v584, %v552
  %v617 = vmax.f32 %v585, %v553
  %v618 = vmax.f32 %v586, %v554
  %v619 = vmax.f32 %v587, %v555
  %v620 = vmax.f32 %v588, %v556
  %v621 = vmax.f32 %v589, %v557
  %v622 = vmax.f32 %v590, %v558
  %v623 = vmax.f32 %v591, %v559
  %v624 = vmax.f32 %v592, %v560
  %v625 = vmax.f32 %v593, %v561
  %v626 = vmax.f32 %v594, %v562
  %v627 = vsub.f32 1.0, %v595
  %v628 = vsub.f32 1.0, %v596
  %v629 = vsub.f32 1.0, %v597
  %v630 = vsub.f32 1.0, %v598
  %v631 = vsub.f32 1.0, %v599
  %v632 = vsub.f32 1.0, %v600
  %v633 = vsub.f32 1.0, %v601
  %v634 = vsub.f32 1.0, %v602
  %v635 = vsub.f32 1.0, %v603
  %v636 = vsub.f32 1.0, %v604
  %v637 = vsub.f32 1.0, %v605
  %v638 = vsub.f32 1.0, %v606
  %v639 = vsub.f32 1.0, %v607
  %v640 = vsub.f32 1.0, %v608
  %v641 = vsub.f32 1.0, %v609
  %v642 = vsub.f32 1.0, %v610
  %v643 = vsub.f32 1.0, %v611
  %v644 = vsub.f32 1.0, %v612
  %v645 = vsub.f32 1.0, %v613
  %v646 = vsub.f32 1.0, %v614
  %v647 = vsub.f32 1.0, %v615
  %v648 = vsub.f32 1.0, %v616
  %v649 = vsub.f32 1.0, %v617
  %v650 = vsub.f32 1.0, %v618
  %v651 = vsub.f32 1.0, %v619
  %v652 = vsub.f32 1.0, %v620
  %v653 = vsub.f32 1.0, %v621
  %v654 = vsub.f32 1.0, %v622
  %v655 = vsub.f32 1.0, %v623
  %v656 = vsub.f32 1.0, %v624
  %v657 = vsub.f32 1.0, %v625
  %v658 = vsub.f32 1.0, %v626
  %v659 = vld [vmem:[%s2] sm:$0xff]
  %v660 = vld [vmem:[%s2 + $0x8] sm:$0xff]
  %v661 = vld [vmem:[%s2 + $0x10] sm:$0xff]
  %v662 = vld [vmem:[%s2 + $0x18] sm:$0xff]
  %v663 = vld [vmem:[%s2 + $0x20] sm:$0xff]
  %v664 = vld [vmem:[%s2 + $0x28] sm:$0xff]
  %v665 = vld [vmem:[%s2 + $0x30] sm:$0xff]
  %v666 = vld [vmem:[%s2 + $0x38] sm:$0xff]
  %v667 = vld [vmem:[%s2 + $0x40] sm:$0xff]
  %v668 = vld [vmem:[%s2 + $0x48] sm:$0xff]
  %v669 = vld [vmem:[%s2 + $0x50] sm:$0xff]
  %v670 = vld [vmem:[%s2 + $0x58] sm:$0xff]
  %v671 = vld [vmem:[%s2 + $0x60] sm:$0xff]
  %v672 = vld [vmem:[%s2 + $0x68] sm:$0xff]
  %v673 = vld [vmem:[%s2 + $0x70] sm:$0xff]
  %v674 = vld [vmem:[%s2 + $0x78] sm:$0xff]
  %v675 = vld [vmem:[%s2 + $0x80] sm:$0xff]
  %v676 = vld [vmem:[%s2 + $0x88] sm:$0xff]
  %v677 = vld [vmem:[%s2 + $0x90] sm:$0xff]
  %v678 = vld [vmem:[%s2 + $0x98] sm:$0xff]
  %v679 = vld [vmem:[%s2 + $0xa0] sm:$0xff]
  %v680 = vld [vmem:[%s2 + $0xa8] sm:$0xff]
  %v681 = vld [vmem:[%s2 + $0xb0] sm:$0xff]
  %v682 = vld [vmem:[%s2 + $0xb8] sm:$0xff]
  %v683 = vld [vmem:[%s2 + $0xc0] sm:$0xff]
  %v684 = vld [vmem:[%s2 + $0xc8] sm:$0xff]
  %v685 = vld [vmem:[%s2 + $0xd0] sm:$0xff]
  %v686 = vld [vmem:[%s2 + $0xd8] sm:$0xff]
  %v687 = vld [vmem:[%s2 + $0xe0] sm:$0xff]
  %v688 = vld [vmem:[%s2 + $0xe8] sm:$0xff]
  %v689 = vld [vmem:[%s2 + $0xf0] sm:$0xff]
  %v690 = vld [vmem:[%s2 + $0xf8] sm:$0xff]
  %v691 = vmul.f32 %v659, %v627
  %v692 = vmul.f32 %v660, %v628
  %v693 = vmul.f32 %v661, %v629
  %v694 = vmul.f32 %v662, %v630
  %v695 = vmul.f32 %v663, %v631
  %v696 = vmul.f32 %v664, %v632
  %v697 = vmul.f32 %v665, %v633
  %v698 = vmul.f32 %v666, %v634
  %v699 = vmul.f32 %v667, %v635
  %v700 = vmul.f32 %v668, %v636
  %v701 = vmul.f32 %v669, %v637
  %v702 = vmul.f32 %v670, %v638
  %v703 = vmul.f32 %v671, %v639
  %v704 = vmul.f32 %v672, %v640
  %v705 = vmul.f32 %v673, %v641
  %v706 = vmul.f32 %v674, %v642
  %v707 = vmul.f32 %v675, %v643
  %v708 = vmul.f32 %v676, %v644
  %v709 = vmul.f32 %v677, %v645
  %v710 = vmul.f32 %v678, %v646
  %v711 = vmul.f32 %v679, %v647
  %v712 = vmul.f32 %v680, %v648
  %v713 = vmul.f32 %v681, %v649
  %v714 = vmul.f32 %v682, %v650
  %v715 = vmul.f32 %v683, %v651
  %v716 = vmul.f32 %v684, %v652
  %v717 = vmul.f32 %v685, %v653
  %v718 = vmul.f32 %v686, %v654
  %v719 = vmul.f32 %v687, %v655
  %v720 = vmul.f32 %v688, %v656
  %v721 = vmul.f32 %v689, %v657
  %v722 = vmul.f32 %v690, %v658
  %s723 = sld [smem:[#allocation3]]
  %v724 = vstv %s723
  %v725 = vmul.f32 %v691, %v724
  %v726 = vmul.f32 %v692, %v724
  %v727 = vmul.f32 %v693, %v724
  %v728 = vmul.f32 %v694, %v724
  %v729 = vmul.f32 %v695, %v724
  %v730 = vmul.f32 %v696, %v724
  %v731 = vmul.f32 %v697, %v724
  %v732 = vmul.f32 %v698, %v724
  %v733 = vmul.f32 %v699, %v724
  %v734 = vmul.f32 %v700, %v724
  %v735 = vmul.f32 %v701, %v724
  %v736 = vmul.f32 %v702, %v724
  %v737 = vmul.f32 %v703, %v724
  %v738 = vmul.f32 %v704, %v724
  %v739 = vmul.f32 %v705, %v724
  %v740 = vmul.f32 %v706, %v724
  %v741 = vmul.f32 %v707, %v724
  %v742 = vmul.f32 %v708, %v724
  %v743 = vmul.f32 %v709, %v724
  %v744 = vmul.f32 %v710, %v724
  %v745 = vmul.f32 %v711, %v724
  %v746 = vmul.f32 %v712, %v724
  %v747 = vmul.f32 %v713, %v724
  %v748 = vmul.f32 %v714, %v724
  %v749 = vmul.f32 %v715, %v724
  %v750 = vmul.f32 %v716, %v724
  %v751 = vmul.f32 %v717, %v724
  %v752 = vmul.f32 %v718, %v724
  %v753 = vmul.f32 %v719, %v724
  %v754 = vmul.f32 %v720, %v724
  %v755 = vmul.f32 %v721, %v724
  %v756 = vmul.f32 %v722, %v724
  %757 = vst.msk [vmem:[%s3] sm:$0xff] %vm43, %v725
  %758 = vst.msk [vmem:[%s3 + $0x8] sm:$0xff] %vm43, %v726
  %759 = vst.msk [vmem:[%s3 + $0x10] sm:$0xff] %vm43, %v727
  %760 = vst.msk [vmem:[%s3 + $0x18] sm:$0xff] %vm43, %v728
  %761 = vst.msk [vmem:[%s3 + $0x20] sm:$0xff] %vm43, %v729
  %762 = vst.msk [vmem:[%s3 + $0x28] sm:$0xff] %vm43, %v730
  %763 = vst.msk [vmem:[%s3 + $0x30] sm:$0xff] %vm43, %v731
  %764 = vst.msk [vmem:[%s3 + $0x38] sm:$0xff] %vm43, %v732
  %765 = vst.msk [vmem:[%s3 + $0x40] sm:$0xff] %vm43, %v733
  %766 = vst.msk [vmem:[%s3 + $0x48] sm:$0xff] %vm43, %v734
  %767 = vst.msk [vmem:[%s3 + $0x50] sm:$0xff] %vm43, %v735
  %768 = vst.msk [vmem:[%s3 + $0x58] sm:$0xff] %vm43, %v736
  %769 = vst.msk [vmem:[%s3 + $0x60] sm:$0xff] %vm43, %v737
  %770 = vst.msk [vmem:[%s3 + $0x68] sm:$0xff] %vm43, %v738
  %771 = vst.msk [vmem:[%s3 + $0x70] sm:$0xff] %vm43, %v739
  %772 = vst.msk [vmem:[%s3 + $0x78] sm:$0xff] %vm43, %v740
  %773 = vst.msk [vmem:[%s3 + $0x80] sm:$0xff] %vm43, %v741
  %774 = vst.msk [vmem:[%s3 + $0x88] sm:$0xff] %vm43, %v742
  %775 = vst.msk [vmem:[%s3 + $0x90] sm:$0xff] %vm43, %v743
  %776 = vst.msk [vmem:[%s3 + $0x98] sm:$0xff] %vm43, %v744
  %777 = vst.msk [vmem:[%s3 + $0xa0] sm:$0xff] %vm43, %v745
  %778 = vst.msk [vmem:[%s3 + $0xa8] sm:$0xff] %vm43, %v746
  %779 = vst.msk [vmem:[%s3 + $0xb0] sm:$0xff] %vm43, %v747
  %780 = vst.msk [vmem:[%s3 + $0xb8] sm:$0xff] %vm43, %v748
  %781 = vst.msk [vmem:[%s3 + $0xc0] sm:$0xff] %vm43, %v749
  %782 = vst.msk [vmem:[%s3 + $0xc8] sm:$0xff] %vm43, %v750
  %783 = vst.msk [vmem:[%s3 + $0xd0] sm:$0xff] %vm43, %v751
  %784 = vst.msk [vmem:[%s3 + $0xd8] sm:$0xff] %vm43, %v752
  %785 = vst.msk [vmem:[%s3 + $0xe0] sm:$0xff] %vm43, %v753
  %786 = vst.msk [vmem:[%s3 + $0xe8] sm:$0xff] %vm43, %v754
  %787 = vst.msk [vmem:[%s3 + $0xf0] sm:$0xff] %vm43, %v755
  %788 = vst.msk [vmem:[%s3 + $0xf8] sm:$0xff] %vm43, %v756
  // Predicated region
  $region14: #{dropblock_from_mask.3} parent=0 // pred_check
    _
  $region15: #{dropblock_from_mask.3} parent=0 // pred_check_branch
    %790 = sbr.rel (0) target = $region17
  $region16: #{dropblock_from_mask.3} parent=0 // pred_region
    _
  $region17: #{dropblock_from_mask.3} parent=0 // pred_fallthru
    _
  // Predicated region
  $region18: #{dropblock_from_mask.3} parent=0 // pred_check
    _
  $region19: #{dropblock_from_mask.3} parent=0 // pred_check_branch
    %792 = sbr.rel (0) target = $region21
  $region20: #{dropblock_from_mask.3} parent=0 // pred_region
    _
  $region21: #{dropblock_from_mask.3} parent=0 // pred_fallthru
    _

</llo_original>
